<compile_context>
chip_gen: v6e
topology: v6e:2x2x1
jax: 0.10.0
libtpu: 0.0.40
codegen_flags: <defaults>
</compile_context>

<pallas_src>
import functools

import jax
import jax.numpy as jnp
import numpy as np
from jax import lax
from jax.experimental import pallas as pl
from jax.experimental.pallas import tpu as pltpu


# ----------------------------------------------------------------------------
# Kernel
# ----------------------------------------------------------------------------
def bottleneck_kernel(TH, W,
                      gate_ref, x_ref, mask_ref, w1sc_ref, t1_ref, tsc_ref,
                      w2_ref, t2_ref, w3_ref, t3_ref, out_ref):
    SL = (TH + 2) * W          # slab pixels: TH rows + 1 halo row top/bottom
    IL = TH * W                # interior pixels owned by this grid step
    P_p = t1_ref.shape[-1]
    Cout_p = t3_ref.shape[-1]
    n = pl.program_id(0)

    xb = x_ref[...].reshape(SL, x_ref.shape[-1])              # (SL, Cin_p) bf16

    # conv1 (1x1) and the shortcut's 1x1 conv fused into one MXU matmul
    # (one weight push; xb's live range ends here).
    both = jnp.dot(xb, w1sc_ref[...], preferred_element_type=jnp.float32)
    out1 = jnp.maximum(both[:, :P_p] + t1_ref[...], 0.0)      # bn1 + relu (f32)
    sc = both[W:W + IL, P_p:] + tsc_ref[...]                  # shortcut bn (interior)

    # Precomputed masks: col 0 zeroes halo rows that fall outside the image
    # (the 3x3's zero padding acts on conv1's OUTPUT, exactly as in the
    # reference); cols 1/2 zero the dx = -1/+1 taps that would wrap across the
    # left/right image edge (pltpu.roll is circular).
    m = mask_ref[0]                                           # (SL, 3) f32
    out1 = out1 * m[:, 0:1]
    ml, mr = m[:, 1:2], m[:, 2:3]

    # conv2 (3x3, stride 1, pad 1): three K = 3*P_p matmuls (one per kernel
    # row), accumulated in f32 — no (SL, 9*P_p) im2col slab.
    acc = None
    for dy in (-1, 0, 1):
        cols = []
        for dx in (-1, 0, 1):
            s = dy * W + dx
            c = out1 if s == 0 else pltpu.roll(out1, (-s) % SL, axis=0)
            if dx == -1:
                c = c * ml
            elif dx == 1:
                c = c * mr
            cols.append(c.astype(jnp.bfloat16))
        grp = jnp.concatenate(cols, axis=1)                   # (SL, 3*P_p) bf16
        part = jnp.dot(grp, w2_ref[dy + 1],
                       preferred_element_type=jnp.float32)
        acc = part if acc is None else acc + part
    out2 = jnp.maximum(acc[W:W + IL, :] + t2_ref[...], 0.0)   # bn2 + relu (interior)

    # conv3 (1x1) + bn3
    out3 = jnp.dot(out2.astype(jnp.bfloat16), w3_ref[...],
                   preferred_element_type=jnp.float32) + t3_ref[...]

    # Gated residual add + final relu. The per-image gate was computed in f32
    # outside the kernel and arrives through SMEM.
    gate = gate_ref[n, 0]
    res = jnp.maximum(sc + out3 * gate, 0.0)
    out_ref[...] = res.reshape(1, TH, W, Cout_p).astype(out_ref.dtype)


# ----------------------------------------------------------------------------
# Wrapper
# ----------------------------------------------------------------------------
def _pad2(a, rows, cols, dtype=None):
    r, c = a.shape
    a = jnp.pad(a, ((0, rows - r), (0, cols - c)))
    return a.astype(dtype) if dtype is not None else a


def _live_bytes(th, W, Cin_p, P_p, Cout_p):
    """Rough per-grid-step VMEM working set."""
    sl = (th + 2) * W
    il = th * W
    b = 2 * sl * Cin_p * 2                                    # x slab (bf16, 2 bufs)
    b += 2 * il * Cout_p * 2                                  # out slab (bf16, 2 bufs)
    b += 2 * (Cin_p * (P_p + Cout_p) + 9 * P_p * P_p + P_p * Cout_p)  # bf16 weights
    b += sl * (P_p + Cout_p) * 4                              # fused conv1/shortcut result
    b += sl * P_p * 4                                         # out1 / rolled taps
    b += sl * 3 * P_p * 2                                     # one tap group (bf16)
    b += sl * P_p * 4                                         # conv2 accumulator
    b += il * (P_p * 4 + Cout_p * 8)                          # out2 + out3 + residual
    return b


def _pick_tile_rows(H, W, Cin_p, P_p, Cout_p, budget_bytes):
    best = 1
    for th in range(1, H + 1):
        if H % th == 0 and _live_bytes(th, W, Cin_p, P_p, Cout_p) <= budget_bytes:
            best = th
    return best


def bottleneck_forward(x_nchw, params, H, W, *, tile_rows=None, lane=128,
                       vmem_budget_bytes=24 * 2**20):
    N, Cin = x_nchw.shape[0], x_nchw.shape[1]
    P = params["w1f"].shape[1]
    Cout = params["w3f"].shape[1]

    def rup(v):
        return ((v + lane - 1) // lane) * lane

    Cin_p, P_p, Cout_p = rup(Cin), rup(P), rup(Cout)

    # ---- gating head, decoupled from the fused kernel and kept in f32 (the
    # gate scales the whole residual branch, and the global pool would block
    # HW tiling). Tiny: O(N*Cin) FLOPs -> plain XLA is the right tool.
    x_nhwc = jnp.transpose(x_nchw, (0, 2, 3, 1))              # (N,H,W,Cin) f32
    pooled = jnp.mean(x_nhwc, axis=(1, 2))                    # global avg pool
    h = jnp.maximum(pooled @ params["wfc1f"] + params["tfc1f"], 0.0)
    wg = h @ params["wfc2"] + params["bfc2"]                  # (N, 2) f32
    gate = wg[:, 1:2]                                         # (N, 1) f32 -> SMEM

    # ---- row-slab tiling over H with a 1-row halo for the 3x3 ----
    TH = tile_rows if tile_rows is not None else _pick_tile_rows(
        H, W, Cin_p, P_p, Cout_p, vmem_budget_bytes)
    if N * (H // TH) < 2:       # guarantee >= 2 grid steps (megacore / pipelining)
        smaller = [d for d in range(1, TH) if H % d == 0]
        if smaller:
            TH = max(smaller)
    assert H % TH == 0, "tile_rows must divide H"
    T = H // TH
    SL = (TH + 2) * W

    # ---- input: NHWC, channels padded to a lane multiple, bf16 at the HBM
    # boundary, pre-gathered into (N, T, TH+2, W, Cin_p) row slabs that already
    # carry their 1-row halo (duplicating 2 rows/slab of HBM traffic buys a
    # plain Blocked BlockSpec instead of overlapping windows).
    xp = jnp.pad(x_nhwc, ((0, 0), (0, 0), (0, 0), (0, Cin_p - Cin))
                 ).astype(jnp.bfloat16)
    xp = jnp.pad(xp, ((0, 0), (1, 1), (0, 0), (0, 0)))        # zero halo rows
    row_idx = np.arange(T)[:, None] * TH + np.arange(TH + 2)[None, :]
    x_tiles = xp[:, row_idx]                                  # (N, T, TH+2, W, Cin_p)

    # ---- per-tile validity masks, precomputed host-side (no iota // % in kernel)
    lr = np.arange(SL) // W
    cidx = np.arange(SL) % W
    masks = np.zeros((T, SL, 3), np.float32)
    for t in range(T):
        grow = t * TH + lr - 1
        masks[t, :, 0] = (grow >= 0) & (grow < H)             # real image row?
        masks[t, :, 1] = cidx >= 1                            # dx = -1 valid
        masks[t, :, 2] = cidx <= W - 2                        # dx = +1 valid
    masks = jnp.asarray(masks)

    # ---- weights: BN folded, bf16, channel dims lane-padded; conv1 and the
    # shortcut concatenated into one matmul operand.
    bf16 = jnp.bfloat16
    w1sc = jnp.concatenate([_pad2(params["w1f"], Cin_p, P_p),
                            _pad2(params["wscf"], Cin_p, Cout_p)],
                           axis=1).astype(bf16)               # (Cin_p, P_p+Cout_p)
    t1 = _pad2(params["t1"], 1, P_p)
    tsc = _pad2(params["tsc"], 1, Cout_p)
    w2 = jnp.pad(params["w2f"], ((0, 0), (0, P_p - P), (0, P_p - P)))
    w2 = w2.reshape(3, 3 * P_p, P_p).astype(bf16)             # grouped by kernel row
    t2 = _pad2(params["t2"], 1, P_p)
    w3 = _pad2(params["w3f"], P_p, Cout_p, bf16)
    t3 = _pad2(params["t3"], 1, Cout_p)

    def full(shape):
        zeros = (0,) * len(shape)
        return pl.BlockSpec(shape, lambda n, t, _z=zeros: _z)

    kernel = functools.partial(bottleneck_kernel, TH, W)
    est = _live_bytes(TH, W, Cin_p, P_p, Cout_p)
    # Explicit scoped-VMEM limit sized to the working set (defaults are 16/32 MiB).
    vmem_limit = int(min(max(2 * est, 32 * 2**20), 96 * 2**20))

    out_nhwc = pl.pallas_call(
        kernel,
        grid=(N, T),
        in_specs=[
            pl.BlockSpec(memory_space=pltpu.MemorySpace.SMEM),             # gate (N,1)
            pl.BlockSpec((1, 1, TH + 2, W, Cin_p), lambda n, t: (n, t, 0, 0, 0)),
            pl.BlockSpec((1, SL, 3), lambda n, t: (t, 0, 0)),              # masks
            full((Cin_p, P_p + Cout_p)),                                   # w1 | wsc
            full((1, P_p)), full((1, Cout_p)),                             # t1, tsc
            full((3, 3 * P_p, P_p)), full((1, P_p)),                       # w2, t2
            full((P_p, Cout_p)), full((1, Cout_p)),                        # w3, t3
        ],
        out_specs=pl.BlockSpec((1, TH, W, Cout_p), lambda n, t: (n, t, 0, 0)),
        out_shape=jax.ShapeDtypeStruct((N, H, W, Cout_p), jnp.bfloat16),
        compiler_params=pltpu.CompilerParams(
            dimension_semantics=("parallel", "parallel"),
            vmem_limit_bytes=vmem_limit),
    )(gate, x_tiles, masks, w1sc, t1, tsc, w2, t2, w3, t3)

    out = (out_nhwc[..., :Cout].astype(jnp.float32)
           .transpose(0, 3, 1, 2))                            # back to NCHW
    return out, wg[:, 1].reshape(N, 1, 1)                     # == (out, w[:, 1])


# ----------------------------------------------------------------------------
# Synthetic parameters + plain-JAX reference (for validation)
# ----------------------------------------------------------------------------
def init_params(key, Cin, P, Cout):
    """Deterministic synthetic parameters; BN folded into per-channel scale/shift."""
    eps = 1e-5
    ks = jax.random.split(key, 32)

    def bn_fold(k0, k1, k2, k3, c):
        gamma = jax.random.uniform(k0, (c,), jnp.float32, 0.5, 1.5)
        beta = 0.1 * jax.random.normal(k1, (c,), jnp.float32)
        mean = 0.1 * jax.random.normal(k2, (c,), jnp.float32)
        var = jax.random.uniform(k3, (c,), jnp.float32, 0.5, 1.5)
        s = gamma / jnp.sqrt(var + eps)
        t = beta - mean * s
        return s, t

    w_fc1 = 0.1 * jax.random.normal(ks[0], (Cin, 16), jnp.float32)
    b_fc1 = 0.1 * jax.random.normal(ks[1], (16,), jnp.float32)
    s_fc1, t_fc1 = bn_fold(ks[2], ks[3], ks[4], ks[5], 16)
    w_fc2 = 0.1 * jax.random.normal(ks[6], (16, 2), jnp.float32)
    b_fc2 = jnp.array([0.1, 2.0], jnp.float32)          # fc2.bias.data init in __init__

    w1 = 0.1 * jax.random.normal(ks[7], (Cin, P), jnp.float32)
    s1, t1 = bn_fold(ks[8], ks[9], ks[10], ks[11], P)
    w2 = 0.1 * jax.random.normal(ks[12], (3, 3, P, P), jnp.float32)   # HWIO
    s2, t2 = bn_fold(ks[13], ks[14], ks[15], ks[16], P)
    w3 = 0.1 * jax.random.normal(ks[17], (P, Cout), jnp.float32)
    s3, t3 = bn_fold(ks[18], ks[19], ks[20], ks[21], Cout)
    wsc = 0.1 * jax.random.normal(ks[22], (Cin, Cout), jnp.float32)
    ssc, tsc = bn_fold(ks[23], ks[24], ks[25], ks[26], Cout)

    return dict(
        wfc1f=w_fc1 * s_fc1, tfc1f=(b_fc1 * s_fc1 + t_fc1).reshape(1, 16),
        wfc2=w_fc2, bfc2=b_fc2.reshape(1, 2),
        w1f=w1 * s1, t1=t1.reshape(1, P),
        w2f=(w2 * s2).reshape(9, P, P), t2=t2.reshape(1, P),
        w3f=w3 * s3, t3=t3.reshape(1, Cout),
        wscf=wsc * ssc, tsc=tsc.reshape(1, Cout),
    )


def reference_forward(x_nchw, params, H, W):
    """Plain-JAX f32 reference of the same forward pass."""
    x = jnp.transpose(x_nchw, (0, 2, 3, 1))                        # NHWC
    P = params["w1f"].shape[1]
    pooled = jnp.mean(x, axis=(1, 2))
    h = jnp.maximum(pooled @ params["wfc1f"] + params["tfc1f"], 0.0)
    wg = h @ params["wfc2"] + params["bfc2"]
    out1 = jnp.maximum(
        jnp.einsum("nhwc,cp->nhwp", x, params["w1f"]) + params["t1"], 0.0)
    w2 = params["w2f"].reshape(3, 3, P, P)
    out2 = lax.conv_general_dilated(out1, w2, (1, 1), ((1, 1), (1, 1)),
                                    dimension_numbers=("NHWC", "HWIO", "NHWC"))
    out2 = jnp.maximum(out2 + params["t2"], 0.0)
    out3 = jnp.einsum("nhwp,pq->nhwq", out2, params["w3f"]) + params["t3"]
    sc = jnp.einsum("nhwc,cq->nhwq", x, params["wscf"]) + params["tsc"]
    out = jnp.maximum(sc + out3 * wg[:, 1][:, None, None, None], 0.0)
    return jnp.transpose(out, (0, 3, 1, 2)), wg[:, 1][:, None, None]


if __name__ == "__main__":
    N, Cin, H, W = 2, 8, 8, 8          # input_planes = 8
    P = 4                              # out_planes
    Cout = 4 * P                       # expansion * out_planes (shortcut has conv+bn)

    key = jax.random.PRNGKey(0)
    kx, kp, ka = jax.random.split(key, 3)
    x = jax.random.normal(kx, (N, Cin, H, W), jnp.float32)
    action = jax.random.randint(ka, (N,), 0, 2)   # unused by forward (as in PyTorch)
    params = init_params(kp, Cin, P, Cout)

    # tile_rows=4 -> grid (N=2, T=2): exercises the halo/row-slab path and gives
    # >= 2 grid steps for megacore sharding / pipelining.
    out, w1 = bottleneck_forward(x, params, H, W, tile_rows=4)
    jax.block_until_ready((out, w1))

    ref_out, ref_w1 = reference_forward(x, params, H, W)
    assert out.shape == (N, Cout, H, W) and w1.shape == (N, 1, 1)
    # bf16 matmul operands / bf16 HBM I/O (f32 accumulation) vs f32 reference.
    np.testing.assert_allclose(np.asarray(out), np.asarray(ref_out),
                               rtol=2e-2, atol=2e-2)
    np.testing.assert_allclose(np.asarray(w1), np.asarray(ref_w1),
                               rtol=2e-2, atol=2e-2)
    print("KERNEL_OK")
</pallas_src>

<mosaic_0001>
module attributes {stable_mosaic.version = 11 : i64} {
  func.func @bottleneck_kernel(%arg0: i32, %arg1: i32, %arg2: memref<2x1xf32, #tpu.memory_space<smem>>, %arg3: memref<1x1x6x8x128xbf16, #tpu.memory_space<vmem>>, %arg4: memref<1x48x3xf32, #tpu.memory_space<vmem>>, %arg5: memref<128x256xbf16, #tpu.memory_space<vmem>>, %arg6: memref<1x128xf32, #tpu.memory_space<vmem>>, %arg7: memref<1x128xf32, #tpu.memory_space<vmem>>, %arg8: memref<3x384x128xbf16, #tpu.memory_space<vmem>>, %arg9: memref<1x128xf32, #tpu.memory_space<vmem>>, %arg10: memref<128x128xbf16, #tpu.memory_space<vmem>>, %arg11: memref<1x128xf32, #tpu.memory_space<vmem>>, %arg12: memref<1x4x8x128xbf16, #tpu.memory_space<vmem>>) attributes {dimension_semantics = [#tpu.dimension_semantics<parallel>, #tpu.dimension_semantics<parallel>], iteration_bounds = array<i64: 2, 2>, scalar_prefetch = 0 : i64, scratch_operands = 0 : i64, tpu.core_type = #tpu.core_type<tc>, window_params = [{transform_indices = @transform_0, window_bounds = array<i64: 2, 1>}, {transform_indices = @transform_1, window_bounds = array<i64: 1, 1, 6, 8, 128>}, {transform_indices = @transform_2, window_bounds = array<i64: 1, 48, 3>}, {pipeline_mode = #tpu.pipeline_mode<synchronous>, transform_indices = @transform_3, window_bounds = array<i64: 128, 256>}, {pipeline_mode = #tpu.pipeline_mode<synchronous>, transform_indices = @transform_4, window_bounds = array<i64: 1, 128>}, {pipeline_mode = #tpu.pipeline_mode<synchronous>, transform_indices = @transform_5, window_bounds = array<i64: 1, 128>}, {pipeline_mode = #tpu.pipeline_mode<synchronous>, transform_indices = @transform_6, window_bounds = array<i64: 3, 384, 128>}, {pipeline_mode = #tpu.pipeline_mode<synchronous>, transform_indices = @transform_7, window_bounds = array<i64: 1, 128>}, {pipeline_mode = #tpu.pipeline_mode<synchronous>, transform_indices = @transform_8, window_bounds = array<i64: 128, 128>}, {pipeline_mode = #tpu.pipeline_mode<synchronous>, transform_indices = @transform_9, window_bounds = array<i64: 1, 128>}, {transform_indices = @transform_10, window_bounds = array<i64: 1, 4, 8, 128>}]} {
    %c0 = arith.constant 0 : index
    %c0_0 = arith.constant 0 : index
    %c0_1 = arith.constant 0 : index
    %c0_2 = arith.constant 0 : index
    %c0_3 = arith.constant 0 : index
    %0 = vector.load %arg3[%c0, %c0_0, %c0_1, %c0_2, %c0_3] : memref<1x1x6x8x128xbf16, #tpu.memory_space<vmem>>, vector<1x1x6x8x128xbf16>
    %1 = vector.shape_cast %0 : vector<1x1x6x8x128xbf16> to vector<48x128xbf16>
    %c0_4 = arith.constant 0 : index
    %c0_5 = arith.constant 0 : index
    %2 = vector.load %arg5[%c0_4, %c0_5] : memref<128x256xbf16, #tpu.memory_space<vmem>>, vector<128x256xbf16>
    %cst = arith.constant dense<0.000000e+00> : vector<48x256xf32>
    %3 = tpu.matmul %1, %2, %cst {dimension_numbers = #tpu.dot_dimension_numbers<[1], [0], [0], [1], [0, 0, 1, 1], [], []>} : vector<48x128xbf16>, vector<128x256xbf16>, vector<48x256xf32> -> vector<48x256xf32>
    %4 = vector.extract_strided_slice %3 {offsets = [0, 0], sizes = [48, 128], strides = [1, 1]} : vector<48x256xf32> to vector<48x128xf32>
    %c0_6 = arith.constant 0 : index
    %c0_7 = arith.constant 0 : index
    %5 = vector.load %arg6[%c0_6, %c0_7] : memref<1x128xf32, #tpu.memory_space<vmem>>, vector<1x128xf32>
    %6 = vector.broadcast %5 : vector<1x128xf32> to vector<48x128xf32>
    %7 = arith.addf %4, %6 : vector<48x128xf32>
    %cst_8 = arith.constant 0.000000e+00 : f32
    %8 = vector.broadcast %cst_8 : f32 to vector<48x128xf32>
    %9 = arith.maximumf %7, %8 : vector<48x128xf32>
    %10 = vector.extract_strided_slice %3 {offsets = [8, 128], sizes = [32, 128], strides = [1, 1]} : vector<48x256xf32> to vector<32x128xf32>
    %c0_9 = arith.constant 0 : index
    %c0_10 = arith.constant 0 : index
    %11 = vector.load %arg7[%c0_9, %c0_10] : memref<1x128xf32, #tpu.memory_space<vmem>>, vector<1x128xf32>
    %12 = vector.broadcast %11 : vector<1x128xf32> to vector<32x128xf32>
    %13 = arith.addf %10, %12 : vector<32x128xf32>
    %c0_11 = arith.constant 0 : index
    %c0_12 = arith.constant 0 : index
    %c0_13 = arith.constant 0 : index
    %14 = vector.load %arg4[%c0_11, %c0_12, %c0_13] : memref<1x48x3xf32, #tpu.memory_space<vmem>>, vector<1x48x3xf32>
    %15 = vector.shape_cast %14 : vector<1x48x3xf32> to vector<48x3xf32>
    %16 = vector.extract_strided_slice %15 {offsets = [0, 0], sizes = [48, 1], strides = [1, 1]} : vector<48x3xf32> to vector<48x1xf32>
    %17 = vector.broadcast %16 : vector<48x1xf32> to vector<48x128xf32>
    %18 = arith.mulf %9, %17 : vector<48x128xf32>
    %19 = vector.extract_strided_slice %15 {offsets = [0, 1], sizes = [48, 1], strides = [1, 1]} : vector<48x3xf32> to vector<48x1xf32>
    %20 = vector.extract_strided_slice %15 {offsets = [0, 2], sizes = [48, 1], strides = [1, 1]} : vector<48x3xf32> to vector<48x1xf32>
    %c9_i32 = arith.constant 9 : i32
    %21 = tpu.dynamic_rotate %18 by %c9_i32 dim 0 : vector<48x128xf32>, i32 -> vector<48x128xf32>
    %22 = vector.broadcast %19 : vector<48x1xf32> to vector<48x128xf32>
    %23 = arith.mulf %21, %22 : vector<48x128xf32>
    %24 = arith.truncf %23 : vector<48x128xf32> to vector<48x128xbf16>
    %c8_i32 = arith.constant 8 : i32
    %25 = tpu.dynamic_rotate %18 by %c8_i32 dim 0 : vector<48x128xf32>, i32 -> vector<48x128xf32>
    %26 = arith.truncf %25 : vector<48x128xf32> to vector<48x128xbf16>
    %c7_i32 = arith.constant 7 : i32
    %27 = tpu.dynamic_rotate %18 by %c7_i32 dim 0 : vector<48x128xf32>, i32 -> vector<48x128xf32>
    %28 = vector.broadcast %20 : vector<48x1xf32> to vector<48x128xf32>
    %29 = arith.mulf %27, %28 : vector<48x128xf32>
    %30 = arith.truncf %29 : vector<48x128xf32> to vector<48x128xbf16>
    %31 = tpu.concatenate %24, %26, %30 in 1 : vector<48x128xbf16>, vector<48x128xbf16>, vector<48x128xbf16> -> vector<48x384xbf16>
    %c0_14 = arith.constant 0 : index
    %c0_15 = arith.constant 0 : index
    %c0_16 = arith.constant 0 : index
    %32 = vector.load %arg8[%c0_14, %c0_15, %c0_16] : memref<3x384x128xbf16, #tpu.memory_space<vmem>>, vector<1x384x128xbf16>
    %33 = vector.shape_cast %32 : vector<1x384x128xbf16> to vector<384x128xbf16>
    %cst_17 = arith.constant dense<0.000000e+00> : vector<48x128xf32>
    %34 = tpu.matmul %31, %33, %cst_17 {dimension_numbers = #tpu.dot_dimension_numbers<[1], [0], [0], [1], [0, 0, 1, 1], [], []>} : vector<48x384xbf16>, vector<384x128xbf16>, vector<48x128xf32> -> vector<48x128xf32>
    %c1_i32 = arith.constant 1 : i32
    %35 = tpu.dynamic_rotate %18 by %c1_i32 dim 0 : vector<48x128xf32>, i32 -> vector<48x128xf32>
    %36 = vector.broadcast %19 : vector<48x1xf32> to vector<48x128xf32>
    %37 = arith.mulf %35, %36 : vector<48x128xf32>
    %38 = arith.truncf %37 : vector<48x128xf32> to vector<48x128xbf16>
    %39 = arith.truncf %18 : vector<48x128xf32> to vector<48x128xbf16>
    %c47_i32 = arith.constant 47 : i32
    %40 = tpu.dynamic_rotate %18 by %c47_i32 dim 0 : vector<48x128xf32>, i32 -> vector<48x128xf32>
    %41 = vector.broadcast %20 : vector<48x1xf32> to vector<48x128xf32>
    %42 = arith.mulf %40, %41 : vector<48x128xf32>
    %43 = arith.truncf %42 : vector<48x128xf32> to vector<48x128xbf16>
    %44 = tpu.concatenate %38, %39, %43 in 1 : vector<48x128xbf16>, vector<48x128xbf16>, vector<48x128xbf16> -> vector<48x384xbf16>
    %c1 = arith.constant 1 : index
    %c0_18 = arith.constant 0 : index
    %c0_19 = arith.constant 0 : index
    %45 = vector.load %arg8[%c1, %c0_18, %c0_19] : memref<3x384x128xbf16, #tpu.memory_space<vmem>>, vector<1x384x128xbf16>
    %46 = vector.shape_cast %45 : vector<1x384x128xbf16> to vector<384x128xbf16>
    %cst_20 = arith.constant dense<0.000000e+00> : vector<48x128xf32>
    %47 = tpu.matmul %44, %46, %cst_20 {dimension_numbers = #tpu.dot_dimension_numbers<[1], [0], [0], [1], [0, 0, 1, 1], [], []>} : vector<48x384xbf16>, vector<384x128xbf16>, vector<48x128xf32> -> vector<48x128xf32>
    %48 = arith.addf %34, %47 : vector<48x128xf32>
    %c41_i32 = arith.constant 41 : i32
    %49 = tpu.dynamic_rotate %18 by %c41_i32 dim 0 : vector<48x128xf32>, i32 -> vector<48x128xf32>
    %50 = vector.broadcast %19 : vector<48x1xf32> to vector<48x128xf32>
    %51 = arith.mulf %49, %50 : vector<48x128xf32>
    %52 = arith.truncf %51 : vector<48x128xf32> to vector<48x128xbf16>
    %c40_i32 = arith.constant 40 : i32
    %53 = tpu.dynamic_rotate %18 by %c40_i32 dim 0 : vector<48x128xf32>, i32 -> vector<48x128xf32>
    %54 = arith.truncf %53 : vector<48x128xf32> to vector<48x128xbf16>
    %c39_i32 = arith.constant 39 : i32
    %55 = tpu.dynamic_rotate %18 by %c39_i32 dim 0 : vector<48x128xf32>, i32 -> vector<48x128xf32>
    %56 = vector.broadcast %20 : vector<48x1xf32> to vector<48x128xf32>
    %57 = arith.mulf %55, %56 : vector<48x128xf32>
    %58 = arith.truncf %57 : vector<48x128xf32> to vector<48x128xbf16>
    %59 = tpu.concatenate %52, %54, %58 in 1 : vector<48x128xbf16>, vector<48x128xbf16>, vector<48x128xbf16> -> vector<48x384xbf16>
    %c2 = arith.constant 2 : index
    %c0_21 = arith.constant 0 : index
    %c0_22 = arith.constant 0 : index
    %60 = vector.load %arg8[%c2, %c0_21, %c0_22] : memref<3x384x128xbf16, #tpu.memory_space<vmem>>, vector<1x384x128xbf16>
    %61 = vector.shape_cast %60 : vector<1x384x128xbf16> to vector<384x128xbf16>
    %cst_23 = arith.constant dense<0.000000e+00> : vector<48x128xf32>
    %62 = tpu.matmul %59, %61, %cst_23 {dimension_numbers = #tpu.dot_dimension_numbers<[1], [0], [0], [1], [0, 0, 1, 1], [], []>} : vector<48x384xbf16>, vector<384x128xbf16>, vector<48x128xf32> -> vector<48x128xf32>
    %63 = arith.addf %48, %62 : vector<48x128xf32>
    %64 = vector.extract_strided_slice %63 {offsets = [8, 0], sizes = [32, 128], strides = [1, 1]} : vector<48x128xf32> to vector<32x128xf32>
    %c0_24 = arith.constant 0 : index
    %c0_25 = arith.constant 0 : index
    %65 = vector.load %arg9[%c0_24, %c0_25] : memref<1x128xf32, #tpu.memory_space<vmem>>, vector<1x128xf32>
    %66 = vector.broadcast %65 : vector<1x128xf32> to vector<32x128xf32>
    %67 = arith.addf %64, %66 : vector<32x128xf32>
    %cst_26 = arith.constant 0.000000e+00 : f32
    %68 = vector.broadcast %cst_26 : f32 to vector<32x128xf32>
    %69 = arith.maximumf %67, %68 : vector<32x128xf32>
    %70 = arith.truncf %69 : vector<32x128xf32> to vector<32x128xbf16>
    %c0_27 = arith.constant 0 : index
    %c0_28 = arith.constant 0 : index
    %71 = vector.load %arg10[%c0_27, %c0_28] : memref<128x128xbf16, #tpu.memory_space<vmem>>, vector<128x128xbf16>
    %cst_29 = arith.constant dense<0.000000e+00> : vector<32x128xf32>
    %72 = tpu.matmul %70, %71, %cst_29 {dimension_numbers = #tpu.dot_dimension_numbers<[1], [0], [0], [1], [0, 0, 1, 1], [], []>} : vector<32x128xbf16>, vector<128x128xbf16>, vector<32x128xf32> -> vector<32x128xf32>
    %c0_30 = arith.constant 0 : index
    %c0_31 = arith.constant 0 : index
    %73 = vector.load %arg11[%c0_30, %c0_31] : memref<1x128xf32, #tpu.memory_space<vmem>>, vector<1x128xf32>
    %74 = vector.broadcast %73 : vector<1x128xf32> to vector<32x128xf32>
    %75 = arith.addf %72, %74 : vector<32x128xf32>
    %76 = arith.index_cast %arg0 : i32 to index
    %c0_32 = arith.constant 0 : index
    %77 = memref.load %arg2[%76, %c0_32] : memref<2x1xf32, #tpu.memory_space<smem>>
    %78 = vector.broadcast %77 : f32 to vector<32x128xf32>
    %79 = arith.mulf %75, %78 : vector<32x128xf32>
    %80 = arith.addf %13, %79 : vector<32x128xf32>
    %cst_33 = arith.constant 0.000000e+00 : f32
    %81 = vector.broadcast %cst_33 : f32 to vector<32x128xf32>
    %82 = arith.maximumf %80, %81 : vector<32x128xf32>
    %83 = vector.shape_cast %82 : vector<32x128xf32> to vector<1x4x8x128xf32>
    %84 = arith.truncf %83 : vector<1x4x8x128xf32> to vector<1x4x8x128xbf16>
    %c0_34 = arith.constant 0 : index
    %c0_35 = arith.constant 0 : index
    %c0_36 = arith.constant 0 : index
    %c0_37 = arith.constant 0 : index
    %85 = vector.load %arg12[%c0_34, %c0_35, %c0_36, %c0_37] : memref<1x4x8x128xbf16, #tpu.memory_space<vmem>>, vector<1x4x8x128xbf16>
    tpu.vector_store %arg12[%c0_34, %c0_35, %c0_36, %c0_37], %84 {strides = array<i32>} : memref<1x4x8x128xbf16, #tpu.memory_space<vmem>>, vector<1x4x8x128xbf16>,
    return
  }
  func.func @transform_0(%arg0: i32, %arg1: i32) -> (i32, i32) {
    %c0_i32 = arith.constant 0 : i32
    %c0_i32_0 = arith.constant 0 : i32
    %c0_i32_1 = arith.constant 0 : i32
    return %c0_i32, %c0_i32_0 : i32, i32
  }
  func.func @transform_1(%arg0: i32, %arg1: i32) -> (i32, i32, i32, i32, i32) {
    %c0_i32 = arith.constant 0 : i32
    %c0_i32_0 = arith.constant 0 : i32
    %c0_i32_1 = arith.constant 0 : i32
    %c0_i32_2 = arith.constant 0 : i32
    return %arg0, %arg1, %c0_i32, %c0_i32_0, %c0_i32_1 : i32, i32, i32, i32, i32
  }
  func.func @transform_2(%arg0: i32, %arg1: i32) -> (i32, i32, i32) {
    %c0_i32 = arith.constant 0 : i32
    %c0_i32_0 = arith.constant 0 : i32
    %c0_i32_1 = arith.constant 0 : i32
    return %arg1, %c0_i32, %c0_i32_0 : i32, i32, i32
  }
  func.func @transform_3(%arg0: i32, %arg1: i32) -> (i32, i32) {
    %c0_i32 = arith.constant 0 : i32
    %c0_i32_0 = arith.constant 0 : i32
    %c0_i32_1 = arith.constant 0 : i32
    return %c0_i32, %c0_i32_0 : i32, i32
  }
  func.func @transform_4(%arg0: i32, %arg1: i32) -> (i32, i32) {
    %c0_i32 = arith.constant 0 : i32
    %c0_i32_0 = arith.constant 0 : i32
    %c0_i32_1 = arith.constant 0 : i32
    return %c0_i32, %c0_i32_0 : i32, i32
  }
  func.func @transform_5(%arg0: i32, %arg1: i32) -> (i32, i32) {
    %c0_i32 = arith.constant 0 : i32
    %c0_i32_0 = arith.constant 0 : i32
    %c0_i32_1 = arith.constant 0 : i32
    return %c0_i32, %c0_i32_0 : i32, i32
  }
  func.func @transform_6(%arg0: i32, %arg1: i32) -> (i32, i32, i32) {
    %c0_i32 = arith.constant 0 : i32
    %c0_i32_0 = arith.constant 0 : i32
    %c0_i32_1 = arith.constant 0 : i32
    %c0_i32_2 = arith.constant 0 : i32
    return %c0_i32, %c0_i32_0, %c0_i32_1 : i32, i32, i32
  }
  func.func @transform_7(%arg0: i32, %arg1: i32) -> (i32, i32) {
    %c0_i32 = arith.constant 0 : i32
    %c0_i32_0 = arith.constant 0 : i32
    %c0_i32_1 = arith.constant 0 : i32
    return %c0_i32, %c0_i32_0 : i32, i32
  }
  func.func @transform_8(%arg0: i32, %arg1: i32) -> (i32, i32) {
    %c0_i32 = arith.constant 0 : i32
    %c0_i32_0 = arith.constant 0 : i32
    %c0_i32_1 = arith.constant 0 : i32
    return %c0_i32, %c0_i32_0 : i32, i32
  }
  func.func @transform_9(%arg0: i32, %arg1: i32) -> (i32, i32) {
    %c0_i32 = arith.constant 0 : i32
    %c0_i32_0 = arith.constant 0 : i32
    %c0_i32_1 = arith.constant 0 : i32
    return %c0_i32, %c0_i32_0 : i32, i32
  }
  func.func @transform_10(%arg0: i32, %arg1: i32) -> (i32, i32, i32, i32) {
    %c0_i32 = arith.constant 0 : i32
    %c0_i32_0 = arith.constant 0 : i32
    %c0_i32_1 = arith.constant 0 : i32
    return %arg0, %arg1, %c0_i32, %c0_i32_0 : i32, i32, i32, i32
  }
}

</mosaic_0001>

<llo_original>
// kernel: tpu_custom_call.1
$region0: #{tpu_custom_call.1}
  #allocation0 [shape = 'u32[]', space=smem, size = 0x4, offset = 0x4, fixed_abs, tag = 'smem constant byte address 0x4 - core index']
  #allocation1 [shape = 'u32[144,128]{1,0:T(1,128)}', space=vmem, size = 0x12000, scoped, tag = 'internal scratch']
  %s0 = inlined_call_operand.vmem [shape: f32[2,1], index: 0, kind: input, shape index: {}]
  %s1 = inlined_call_operand.vmem [shape: bf16[2,2,6,8,128], index: 1, kind: input, shape index: {}]
  %s2 = inlined_call_operand.vmem [shape: f32[2,48,3], index: 2, kind: input, shape index: {}]
  %s3 = inlined_call_operand.hbm [shape: bf16[128,256], index: 3, kind: input, shape index: {}]
  %s4 = inlined_call_operand.vmem [shape: f32[1,128], index: 4, kind: input, shape index: {}]
  %s5 = inlined_call_operand.vmem [shape: f32[1,128], index: 5, kind: input, shape index: {}]
  %s6 = inlined_call_operand.hbm [shape: bf16[3,384,128], index: 6, kind: input, shape index: {}]
  %s7 = inlined_call_operand.vmem [shape: f32[1,128], index: 7, kind: input, shape index: {}]
  %s8 = inlined_call_operand.hbm [shape: bf16[128,128], index: 8, kind: input, shape index: {}]
  %s9 = inlined_call_operand.vmem [shape: f32[1,128], index: 9, kind: input, shape index: {}]
  %s10 = inlined_call_operand.hbm [shape: bf16[2,8,8,128], index: 10, kind: output, shape index: {}]
  %s11 = sld [smem:[#allocation0]]
  $region89: #{tpu_custom_call.1} parent=0
    _
  %s13 = ssub.s32 1, %s11
  %s14 = scalar_select 0, %s13, %s11
  $region1: #{tpu_custom_call.1} parent=0
    #allocation2 [shape = 'u8[1024]{0}', space=smem, size = 0x400, scoped, tag = 'input window, operand 0, single buffered']
    #allocation3 [shape = 's32[2]{0}', space=sflag, size = 0x8, scoped, tag = 'scoped memory for tpu_custom_call.1']
    #allocation4 [shape = 's32[2]{0}', space=sflag, size = 0x8, scoped, tag = 'scoped memory for tpu_custom_call.1']
    #allocation5 [shape = 's32[2]{0}', space=sflag, size = 0x8, scoped, tag = 'scoped memory for tpu_custom_call.1']
    #allocation6 [shape = 'u8[65536]{0}', space=vmem, size = 0x10000, scoped, tag = 'input window, operand 3, single buffered']
    #allocation7 [shape = 'u8[294912]{0}', space=vmem, size = 0x48000, scoped, tag = 'input window, operand 6, single buffered']
    #allocation8 [shape = 's32[1]{0}', space=sflag, size = 0x4, scoped, tag = 'scoped memory for tpu_custom_call.1']
    #allocation9 [shape = 'u8[32768]{0}', space=vmem, size = 0x8000, scoped, tag = 'input window, operand 8, single buffered']
    #allocation10 [shape = 'u8[16384]{0}', space=vmem, size = 0x4000, scoped, tag = 'output window, operand 0']
    %15 = vsyncpa [#allocation5], 0
    %16 = vsyncpa [#allocation3], 0
    %17 = vsyncpa [#allocation8], 0
    %18 = vsyncpa [#allocation4], 0
    %s19 = scalar_lea.sflag [#allocation4], 1
    %20 = vsyncpa %s19, 0
    loop: start=0, step=1, limit=6
    $region2: #{tpu_custom_call.1} parent=1 // loop_pre_header
      _
    $region3: #{tpu_custom_call.1} parent=1 // loop_header
      %s22 = sphi 0, %s26
      %p23 = scmp.ge.s32.totalorder %s22, 6
      %s29 = sphi 0, %s41
      %s30 = sphi 0, %s37
      %s31 = sphi 0, %s29
      %s32 = sphi 0, %s30
      %s33 = sphi 0, %s31
      %s34 = sphi 0, %s32
      %s42 = sphi 0, %s42
      %s44 = sphi 0, %s42
      %s45 = sphi 0, %s44
      %s59 = sphi 0, %s45
      %s67 = sphi 0, %s69
      %s70 = sphi 0, %s67
      %s71 = sphi 0, %s70
      %s87 = sphi 0, %s71
      %s93 = sphi 0, %s95
      %s96 = sphi 0, %s93
      %s97 = sphi 0, %s96
      %s113 = sphi 0, %s97
      %s117 = sphi 0, %s117
      %s119 = sphi 0, %s117
      %s120 = sphi 0, %s119
      %s134 = sphi 0, %s120
      %s138 = sphi 0, %s138
      %s140 = sphi 0, %s138
      %s141 = sphi 0, %s140
      %s155 = sphi 0, %s141
      %s159 = sphi 0, %s159
      %s161 = sphi 0, %s159
      %s162 = sphi 0, %s161
      %s176 = sphi 0, %s162
      %s180 = sphi 0, %s180
      %s182 = sphi 0, %s180
      %s183 = sphi 0, %s182
      %s197 = sphi 0, %s183
      %s201 = sphi 0, %s201
      %s203 = sphi 0, %s201
      %s204 = sphi 0, %s203
      %s218 = sphi 0, %s204
      %s222 = sphi 0, %s222
      %s224 = sphi 0, %s222
      %s225 = sphi 0, %s224
      %s239 = sphi 0, %s225
      %s243 = sphi 0, %s243
      %s245 = sphi 0, %s243
      %s246 = sphi 0, %s245
      %s260 = sphi 0, %s246
      %s268 = sphi 0, %s270
      %s271 = sphi 0, %s268
      %s272 = sphi 0, %s271
      %s288 = sphi 0, %s272
    $region4: #{tpu_custom_call.1} parent=1 // loop_header_branch
      %25 = sbr.rel (%p23) target = $region8
    $region5: #{tpu_custom_call.1} parent=1 // loop_body
      %s27 = ssub.s32 %s22, 1
      %s28 = ssub.s32 %s22, 2
      %s35 = sadd.s32 1, %s30
      %p36 = scmp.ge.s32.totalorder %s35, 2
      %s37 = scalar_select %p36, 0, %s35
      %s38 = sadd.s32 1, %s29
      %s39 = scalar_select %p36, %s38, %s29
      %p40 = scmp.ge.s32.totalorder %s39, 2
      %s41 = scalar_select %p40, 0, %s39
      %s43 = sadd.s32 %s42, 1
      %p46 = scmp.eq.s32.totalorder %s22, 3
      %p47 = scmp.ne.s32.totalorder %s42, %s44
      %p48 = scmp.eq.s32.totalorder %s22, 0
      %p49 = por %p47, %p48
      %p50 = scmp.ne.s32.totalorder %s42, %s44
      %p51 = scmp.eq.s32.totalorder %s27, 3
      %p52 = por %p50, %p51
      %p53 = scmp.ne.s32.totalorder %s44, %s45
      %p54 = scmp.eq.s32.totalorder %s27, 0
      %p55 = por %p53, %p54
      %p56 = scmp.ne.s32.totalorder %s44, %s45
      %p57 = scmp.eq.s32.totalorder %s28, 3
      %p58 = por %p56, %p57
      %p60 = scmp.ne.s32.totalorder %s45, %s59
      %p61 = scmp.eq.s32.totalorder %s28, 0
      %p62 = por %p60, %p61
      %s63 = ssub.s32 %s29, %s41
      %s64 = ssub.s32 %s30, %s37
      %s65 = sor.u32 %s63, %s64
      %p66 = scmp.eq.s32.totalorder %s65, 0
      %s68 = sadd.s32 %s67, 1
      %s69 = scalar_select %p66, %s67, %s68
      %p72 = pneg %p66
      %p73 = scmp.eq.s32.totalorder %s22, 3
      %p74 = por %p72, %p73
      %p75 = scmp.ne.s32.totalorder %s67, %s70
      %p76 = scmp.eq.s32.totalorder %s22, 0
      %p77 = por %p75, %p76
      %p78 = scmp.ne.s32.totalorder %s67, %s70
      %p79 = scmp.eq.s32.totalorder %s27, 3
      %p80 = por %p78, %p79
      %p81 = scmp.ne.s32.totalorder %s70, %s71
      %p82 = scmp.eq.s32.totalorder %s27, 0
      %p83 = por %p81, %p82
      %p84 = scmp.ne.s32.totalorder %s70, %s71
      %p85 = scmp.eq.s32.totalorder %s28, 3
      %p86 = por %p84, %p85
      %p88 = scmp.ne.s32.totalorder %s71, %s87
      %p89 = scmp.eq.s32.totalorder %s28, 0
      %p90 = por %p88, %p89
      %s91 = ssub.s32 %s30, %s37
      %p92 = scmp.eq.s32.totalorder %s91, 0
      %s94 = sadd.s32 %s93, 1
      %s95 = scalar_select %p92, %s93, %s94
      %p98 = pneg %p92
      %p99 = scmp.eq.s32.totalorder %s22, 3
      %p100 = por %p98, %p99
      %p101 = scmp.ne.s32.totalorder %s93, %s96
      %p102 = scmp.eq.s32.totalorder %s22, 0
      %p103 = por %p101, %p102
      %p104 = scmp.ne.s32.totalorder %s93, %s96
      %p105 = scmp.eq.s32.totalorder %s27, 3
      %p106 = por %p104, %p105
      %p107 = scmp.ne.s32.totalorder %s96, %s97
      %p108 = scmp.eq.s32.totalorder %s27, 0
      %p109 = por %p107, %p108
      %p110 = scmp.ne.s32.totalorder %s96, %s97
      %p111 = scmp.eq.s32.totalorder %s28, 3
      %p112 = por %p110, %p111
      %p114 = scmp.ne.s32.totalorder %s97, %s113
      %p115 = scmp.eq.s32.totalorder %s28, 0
      %p116 = por %p114, %p115
      %s118 = sadd.s32 %s117, 1
      %p121 = scmp.eq.s32.totalorder %s22, 3
      %p122 = scmp.ne.s32.totalorder %s117, %s119
      %p123 = scmp.eq.s32.totalorder %s22, 0
      %p124 = por %p122, %p123
      %p125 = scmp.ne.s32.totalorder %s117, %s119
      %p126 = scmp.eq.s32.totalorder %s27, 3
      %p127 = por %p125, %p126
      %p128 = scmp.ne.s32.totalorder %s119, %s120
      %p129 = scmp.eq.s32.totalorder %s27, 0
      %p130 = por %p128, %p129
      %p131 = scmp.ne.s32.totalorder %s119, %s120
      %p132 = scmp.eq.s32.totalorder %s28, 3
      %p133 = por %p131, %p132
      %p135 = scmp.ne.s32.totalorder %s120, %s134
      %p136 = scmp.eq.s32.totalorder %s28, 0
      %p137 = por %p135, %p136
      %s139 = sadd.s32 %s138, 1
      %p142 = scmp.eq.s32.totalorder %s22, 3
      %p143 = scmp.ne.s32.totalorder %s138, %s140
      %p144 = scmp.eq.s32.totalorder %s22, 0
      %p145 = por %p143, %p144
      %p146 = scmp.ne.s32.totalorder %s138, %s140
      %p147 = scmp.eq.s32.totalorder %s27, 3
      %p148 = por %p146, %p147
      %p149 = scmp.ne.s32.totalorder %s140, %s141
      %p150 = scmp.eq.s32.totalorder %s27, 0
      %p151 = por %p149, %p150
      %p152 = scmp.ne.s32.totalorder %s140, %s141
      %p153 = scmp.eq.s32.totalorder %s28, 3
      %p154 = por %p152, %p153
      %p156 = scmp.ne.s32.totalorder %s141, %s155
      %p157 = scmp.eq.s32.totalorder %s28, 0
      %p158 = por %p156, %p157
      %s160 = sadd.s32 %s159, 1
      %p163 = scmp.eq.s32.totalorder %s22, 3
      %p164 = scmp.ne.s32.totalorder %s159, %s161
      %p165 = scmp.eq.s32.totalorder %s22, 0
      %p166 = por %p164, %p165
      %p167 = scmp.ne.s32.totalorder %s159, %s161
      %p168 = scmp.eq.s32.totalorder %s27, 3
      %p169 = por %p167, %p168
      %p170 = scmp.ne.s32.totalorder %s161, %s162
      %p171 = scmp.eq.s32.totalorder %s27, 0
      %p172 = por %p170, %p171
      %p173 = scmp.ne.s32.totalorder %s161, %s162
      %p174 = scmp.eq.s32.totalorder %s28, 3
      %p175 = por %p173, %p174
      %p177 = scmp.ne.s32.totalorder %s162, %s176
      %p178 = scmp.eq.s32.totalorder %s28, 0
      %p179 = por %p177, %p178
      %s181 = sadd.s32 %s180, 1
      %p184 = scmp.eq.s32.totalorder %s22, 3
      %p185 = scmp.ne.s32.totalorder %s180, %s182
      %p186 = scmp.eq.s32.totalorder %s22, 0
      %p187 = por %p185, %p186
      %p188 = scmp.ne.s32.totalorder %s180, %s182
      %p189 = scmp.eq.s32.totalorder %s27, 3
      %p190 = por %p188, %p189
      %p191 = scmp.ne.s32.totalorder %s182, %s183
      %p192 = scmp.eq.s32.totalorder %s27, 0
      %p193 = por %p191, %p192
      %p194 = scmp.ne.s32.totalorder %s182, %s183
      %p195 = scmp.eq.s32.totalorder %s28, 3
      %p196 = por %p194, %p195
      %p198 = scmp.ne.s32.totalorder %s183, %s197
      %p199 = scmp.eq.s32.totalorder %s28, 0
      %p200 = por %p198, %p199
      %s202 = sadd.s32 %s201, 1
      %p205 = scmp.eq.s32.totalorder %s22, 3
      %p206 = scmp.ne.s32.totalorder %s201, %s203
      %p207 = scmp.eq.s32.totalorder %s22, 0
      %p208 = por %p206, %p207
      %p209 = scmp.ne.s32.totalorder %s201, %s203
      %p210 = scmp.eq.s32.totalorder %s27, 3
      %p211 = por %p209, %p210
      %p212 = scmp.ne.s32.totalorder %s203, %s204
      %p213 = scmp.eq.s32.totalorder %s27, 0
      %p214 = por %p212, %p213
      %p215 = scmp.ne.s32.totalorder %s203, %s204
      %p216 = scmp.eq.s32.totalorder %s28, 3
      %p217 = por %p215, %p216
      %p219 = scmp.ne.s32.totalorder %s204, %s218
      %p220 = scmp.eq.s32.totalorder %s28, 0
      %p221 = por %p219, %p220
      %s223 = sadd.s32 %s222, 1
      %p226 = scmp.eq.s32.totalorder %s22, 3
      %p227 = scmp.ne.s32.totalorder %s222, %s224
      %p228 = scmp.eq.s32.totalorder %s22, 0
      %p229 = por %p227, %p228
      %p230 = scmp.ne.s32.totalorder %s222, %s224
      %p231 = scmp.eq.s32.totalorder %s27, 3
      %p232 = por %p230, %p231
      %p233 = scmp.ne.s32.totalorder %s224, %s225
      %p234 = scmp.eq.s32.totalorder %s27, 0
      %p235 = por %p233, %p234
      %p236 = scmp.ne.s32.totalorder %s224, %s225
      %p237 = scmp.eq.s32.totalorder %s28, 3
      %p238 = por %p236, %p237
      %p240 = scmp.ne.s32.totalorder %s225, %s239
      %p241 = scmp.eq.s32.totalorder %s28, 0
      %p242 = por %p240, %p241
      %s244 = sadd.s32 %s243, 1
      %p247 = scmp.eq.s32.totalorder %s22, 3
      %p248 = scmp.ne.s32.totalorder %s243, %s245
      %p249 = scmp.eq.s32.totalorder %s22, 0
      %p250 = por %p248, %p249
      %p251 = scmp.ne.s32.totalorder %s243, %s245
      %p252 = scmp.eq.s32.totalorder %s27, 3
      %p253 = por %p251, %p252
      %p254 = scmp.ne.s32.totalorder %s245, %s246
      %p255 = scmp.eq.s32.totalorder %s27, 0
      %p256 = por %p254, %p255
      %p257 = scmp.ne.s32.totalorder %s245, %s246
      %p258 = scmp.eq.s32.totalorder %s28, 3
      %p259 = por %p257, %p258
      %p261 = scmp.ne.s32.totalorder %s246, %s260
      %p262 = scmp.eq.s32.totalorder %s28, 0
      %p263 = por %p261, %p262
      %s264 = ssub.s32 %s29, %s41
      %s265 = ssub.s32 %s30, %s37
      %s266 = sor.u32 %s264, %s265
      %p267 = scmp.eq.s32.totalorder %s266, 0
      %s269 = sadd.s32 %s268, 1
      %s270 = scalar_select %p267, %s268, %s269
      %p273 = pneg %p267
      %p274 = scmp.eq.s32.totalorder %s22, 3
      %p275 = por %p273, %p274
      %p276 = scmp.ne.s32.totalorder %s268, %s271
      %p277 = scmp.eq.s32.totalorder %s22, 0
      %p278 = por %p276, %p277
      %p279 = scmp.ne.s32.totalorder %s268, %s271
      %p280 = scmp.eq.s32.totalorder %s27, 3
      %p281 = por %p279, %p280
      %p282 = scmp.ne.s32.totalorder %s271, %s272
      %p283 = scmp.eq.s32.totalorder %s27, 0
      %p284 = por %p282, %p283
      %p285 = scmp.ne.s32.totalorder %s271, %s272
      %p286 = scmp.eq.s32.totalorder %s28, 3
      %p287 = por %p285, %p286
      %p289 = scmp.ne.s32.totalorder %s272, %s288
      %p290 = scmp.eq.s32.totalorder %s28, 0
      %p291 = por %p289, %p290
      %p292 = scmp.le.s32.totalorder 1, %s22
      %p293 = scmp.lt.s32.totalorder %s22, 5
      %p294 = pnand %p292, %p293
      %p295 = pneg %p294
      // Predicated region
      $region9: #{tpu_custom_call.1} parent=5 // pred_check
        _
      $region10: #{tpu_custom_call.1} parent=5 // pred_check_branch
        %297 = sbr.rel (%p294) target = $region12
      $region11: #{tpu_custom_call.1} parent=5 // pred_region
        %s298 = ssub.s32 %s22, 1
        // Predicated region
        $region13: #{tpu_custom_call.1} parent=11 // pred_check
          %p299 = pneg %p55
        $region14: #{tpu_custom_call.1} parent=11 // pred_check_branch
          %301 = sbr.rel (%p299) target = $region16
        $region15: #{tpu_custom_call.1} parent=11 // pred_region
          %s303 = ssub.s32 32, 32
          %304 = vsyncadd [#allocation5], %s303
          %s306 = sshll.u32 %s0, 4
          %s307 = int_to_ptr.vmem [resolvable:$true] %s306
          %309 = dma.vmem_to_smem %s307, 32, [#allocation2], [#allocation5]
        $region16: #{tpu_custom_call.1} parent=11 // pred_fallthru
          _
        // Predicated region
        $region17: #{tpu_custom_call.1} parent=11 // pred_check
          %p310 = pneg %p130
        $region18: #{tpu_custom_call.1} parent=11 // pred_check_branch
          %312 = sbr.rel (%p310) target = $region20
        $region19: #{tpu_custom_call.1} parent=11 // pred_region
          %s314 = ssub.s32 2048, 2048
          %315 = vsyncadd [#allocation3], %s314
          %s316 = sshll.u32 [#allocation6], 4
          %s317 = int_to_ptr.vmem [resolvable:$true] %s316
          %322 = dma.hbm_to_vmem [thread:$0]  %s3, 2048, %s317, [#allocation3], 128, 128, 8
        $region20: #{tpu_custom_call.1} parent=11 // pred_fallthru
          _
        // Predicated region
        $region21: #{tpu_custom_call.1} parent=11 // pred_check
          %p323 = pneg %p151
        $region22: #{tpu_custom_call.1} parent=11 // pred_check_branch
          %325 = sbr.rel (%p323) target = $region24
        $region23: #{tpu_custom_call.1} parent=11 // pred_region
          _
        $region24: #{tpu_custom_call.1} parent=11 // pred_fallthru
          _
        // Predicated region
        $region25: #{tpu_custom_call.1} parent=11 // pred_check
          %p326 = pneg %p172
        $region26: #{tpu_custom_call.1} parent=11 // pred_check_branch
          %328 = sbr.rel (%p326) target = $region28
        $region27: #{tpu_custom_call.1} parent=11 // pred_region
          _
        $region28: #{tpu_custom_call.1} parent=11 // pred_fallthru
          _
        // Predicated region
        $region29: #{tpu_custom_call.1} parent=11 // pred_check
          %p329 = pneg %p193
        $region30: #{tpu_custom_call.1} parent=11 // pred_check_branch
          %331 = sbr.rel (%p329) target = $region32
        $region31: #{tpu_custom_call.1} parent=11 // pred_region
          %s333 = ssub.s32 9216, 9216
          %334 = vsyncadd [#allocation8], %s333
          %s335 = sshll.u32 [#allocation7], 4
          %s336 = int_to_ptr.vmem [resolvable:$true] %s335
          %341 = dma.hbm_to_vmem [thread:$0]  %s6, 9216, %s336, [#allocation8], 64, 64, 4
        $region32: #{tpu_custom_call.1} parent=11 // pred_fallthru
          _
        // Predicated region
        $region33: #{tpu_custom_call.1} parent=11 // pred_check
          %p342 = pneg %p214
        $region34: #{tpu_custom_call.1} parent=11 // pred_check_branch
          %344 = sbr.rel (%p342) target = $region36
        $region35: #{tpu_custom_call.1} parent=11 // pred_region
          _
        $region36: #{tpu_custom_call.1} parent=11 // pred_fallthru
          _
        // Predicated region
        $region37: #{tpu_custom_call.1} parent=11 // pred_check
          %p345 = pneg %p235
        $region38: #{tpu_custom_call.1} parent=11 // pred_check_branch
          %347 = sbr.rel (%p345) target = $region40
        $region39: #{tpu_custom_call.1} parent=11 // pred_region
          %s349 = ssub.s32 1024, 1024
          %350 = vsyncadd [#allocation8], %s349
          %s351 = sshll.u32 [#allocation9], 4
          %s352 = int_to_ptr.vmem [resolvable:$true] %s351
          %357 = dma.hbm_to_vmem [thread:$0]  %s8, 1024, %s352, [#allocation8], 64, 64, 4
        $region40: #{tpu_custom_call.1} parent=11 // pred_fallthru
          _
        // Predicated region
        $region41: #{tpu_custom_call.1} parent=11 // pred_check
          %p358 = pneg %p256
        $region42: #{tpu_custom_call.1} parent=11 // pred_check_branch
          %360 = sbr.rel (%p358) target = $region44
        $region43: #{tpu_custom_call.1} parent=11 // pred_region
          _
        $region44: #{tpu_custom_call.1} parent=11 // pred_fallthru
          _
      $region12: #{tpu_custom_call.1} parent=5 // pred_fallthru
        _
      %p361 = scmp.lt.s32.totalorder %s22, 4
      // Predicated region
      $region45: #{tpu_custom_call.1} parent=5 // pred_check
        %p362 = pneg %p361
      $region46: #{tpu_custom_call.1} parent=5 // pred_check_branch
        %364 = sbr.rel (%p362) target = $region48
      $region47: #{tpu_custom_call.1} parent=5 // pred_region
        // Predicated region
        $region49: #{tpu_custom_call.1} parent=47 // pred_check
          %p365 = pneg %p77
        $region50: #{tpu_custom_call.1} parent=47 // pred_check_branch
          %367 = sbr.rel (%p365) target = $region52
        $region51: #{tpu_custom_call.1} parent=47 // pred_region
          %p368 = scmp.lt.s32.totalorder %s29, 1
          %s369 = scalar_select %p368, %s29, 1
          %p370 = scmp.lt.s32.totalorder %s30, 1
          %s371 = scalar_select %p370, %s30, 1
          %s372 = smul.addr %s371, 6
          %s373 = smul.addr %s369, 12
          %s374 = sadd.s32 %s372, %s373
          %s375 = smul.addr %s374, 4
          %s376 = scalar_lea.vmem %s1, %s375
        $region52: #{tpu_custom_call.1} parent=47 // pred_fallthru
          _
        // Predicated region
        $region53: #{tpu_custom_call.1} parent=47 // pred_check
          %p377 = pneg %p103
        $region54: #{tpu_custom_call.1} parent=47 // pred_check_branch
          %379 = sbr.rel (%p377) target = $region56
        $region55: #{tpu_custom_call.1} parent=47 // pred_region
          %p380 = scmp.lt.s32.totalorder %s30, 1
          %s381 = scalar_select %p380, %s30, 1
          %s382 = smul.addr %s381, 6
          %s383 = smul.addr %s382, 8
          %s384 = scalar_lea.vmem %s2, %s383
        $region56: #{tpu_custom_call.1} parent=47 // pred_fallthru
          _
      $region48: #{tpu_custom_call.1} parent=5 // pred_fallthru
        _
      %p385 = scmp.le.s32.totalorder 1, %s22
      %p386 = scmp.lt.s32.totalorder %s22, 5
      %p387 = pnand %p385, %p386
      %p388 = pneg %p387
      // Predicated region
      $region57: #{tpu_custom_call.1} parent=5 // pred_check
        _
      $region58: #{tpu_custom_call.1} parent=5 // pred_check_branch
        %390 = sbr.rel (%p387) target = $region60
      $region59: #{tpu_custom_call.1} parent=5 // pred_region
        %s391 = ssub.s32 %s22, 1
        // Predicated region
        $region61: #{tpu_custom_call.1} parent=59 // pred_check
          %p392 = pneg %p55
        $region62: #{tpu_custom_call.1} parent=59 // pred_check_branch
          %394 = sbr.rel (%p392) target = $region64
        $region63: #{tpu_custom_call.1} parent=59 // pred_region
          %395 = dma.done [#allocation5], 32
        $region64: #{tpu_custom_call.1} parent=59 // pred_fallthru
          _
        // Predicated region
        $region65: #{tpu_custom_call.1} parent=59 // pred_check
          %p396 = pneg %p130
        $region66: #{tpu_custom_call.1} parent=59 // pred_check_branch
          %398 = sbr.rel (%p396) target = $region68
        $region67: #{tpu_custom_call.1} parent=59 // pred_region
          %399 = dma.done [#allocation3], 2048
        $region68: #{tpu_custom_call.1} parent=59 // pred_fallthru
          _
        // Predicated region
        $region69: #{tpu_custom_call.1} parent=59 // pred_check
          %p400 = pneg %p193
        $region70: #{tpu_custom_call.1} parent=59 // pred_check_branch
          %402 = sbr.rel (%p400) target = $region72
        $region71: #{tpu_custom_call.1} parent=59 // pred_region
          %403 = dma.done [#allocation8], 9216
        $region72: #{tpu_custom_call.1} parent=59 // pred_fallthru
          _
        // Predicated region
        $region73: #{tpu_custom_call.1} parent=59 // pred_check
          %p404 = pneg %p235
        $region74: #{tpu_custom_call.1} parent=59 // pred_check_branch
          %406 = sbr.rel (%p404) target = $region76
        $region75: #{tpu_custom_call.1} parent=59 // pred_region
          %407 = dma.done [#allocation8], 1024
        $region76: #{tpu_custom_call.1} parent=59 // pred_fallthru
          _
        %408 = sfence
        %p409 = pneg %p55
        %p410 = pneg %p52
        %p411 = scmp.lt.s32.totalorder %s31, 1
        %s412 = scalar_select %p411, %s31, 1
        %p413 = scmp.lt.s32.totalorder %s32, 1
        %s414 = scalar_select %p413, %s32, 1
        %s415 = smul.addr %s414, 6
        %s416 = smul.addr %s412, 12
        %s417 = sadd.s32 %s415, %s416
        %s418 = smul.addr %s417, 4
        %s419 = scalar_lea.vmem %s1, %s418
        %p420 = pneg %p83
        %p421 = pneg %p80
        %p422 = scmp.lt.s32.totalorder %s32, 1
        %s423 = scalar_select %p422, %s32, 1
        %s424 = smul.addr %s423, 6
        %s425 = smul.addr %s424, 8
        %s426 = scalar_lea.vmem %s2, %s425
        %p427 = pneg %p109
        %p428 = pneg %p106
        %p429 = pneg %p130
        %p430 = pneg %p127
        %p431 = pneg %p151
        %p432 = pneg %p148
        %p433 = pneg %p172
        %p434 = pneg %p169
        %p435 = pneg %p193
        %p436 = pneg %p190
        %p437 = pneg %p214
        %p438 = pneg %p211
        %p439 = pneg %p235
        %p440 = pneg %p232
        %p441 = pneg %p256
        %p442 = pneg %p253
        %p443 = pneg %p284
        %p444 = pneg %p281
        %s445 = sand.u32 %s271, 1
        %s446 = scalar_lea.sflag [#allocation4], %s445
        %s447 = sand.u32 %s271, 1
        %s448 = smul.addr %s447, 16
        %s449 = scalar_lea.vmem [#allocation10], %s448
        %p450 = scmp.lt.s32.totalorder %s31, 1
        %s451 = scalar_select %p450, %s31, 1
        %p452 = scmp.lt.s32.totalorder %s32, 1
        %s453 = scalar_select %p452, %s32, 1
        %s454 = smul.addr %s453, 6
        %s455 = smul.addr %s451, 12
        %s456 = sadd.s32 %s454, %s455
        %s457 = smul.addr %s456, 4
        %s458 = scalar_lea.vmem %s1, %s457
        %p459 = scmp.lt.s32.totalorder %s32, 1
        %s460 = scalar_select %p459, %s32, 1
        %s461 = smul.addr %s460, 6
        %s462 = smul.addr %s461, 8
        %s463 = scalar_lea.vmem %s2, %s462
        %s464 = smul.u32 4, %s32
        %v466 = vld [vmem:[%s458] sm:$0xf]
        %v467 = vld [vmem:[%s458 + $0x4] sm:$0xf]
        %v468 = vld [vmem:[%s458 + $0x8] sm:$0xf]
        %v469 = vld [vmem:[%s458 + $0xc] sm:$0xf]
        %v470 = vld [vmem:[%s458 + $0x10] sm:$0xf]
        %v471 = vld [vmem:[%s458 + $0x14] sm:$0xf]
        %v472 = vld [vmem:[#allocation6] sm:$0xff]
        %v473 = vld [vmem:[#allocation6 + $0x8] sm:$0xff]
        %v474 = vld [vmem:[#allocation6 + $0x10] sm:$0xff]
        %v475 = vld [vmem:[#allocation6 + $0x18] sm:$0xff]
        %v476 = vld [vmem:[#allocation6 + $0x20] sm:$0xff]
        %v477 = vld [vmem:[#allocation6 + $0x28] sm:$0xff]
        %v478 = vld [vmem:[#allocation6 + $0x30] sm:$0xff]
        %v479 = vld [vmem:[#allocation6 + $0x38] sm:$0xff]
        %v480 = vld [vmem:[#allocation6 + $0x40] sm:$0xff]
        %v481 = vld [vmem:[#allocation6 + $0x48] sm:$0xff]
        %v482 = vld [vmem:[#allocation6 + $0x50] sm:$0xff]
        %v483 = vld [vmem:[#allocation6 + $0x58] sm:$0xff]
        %v484 = vld [vmem:[#allocation6 + $0x60] sm:$0xff]
        %v485 = vld [vmem:[#allocation6 + $0x68] sm:$0xff]
        %v486 = vld [vmem:[#allocation6 + $0x70] sm:$0xff]
        %v487 = vld [vmem:[#allocation6 + $0x78] sm:$0xff]
        %v494 = vunpack.c.l.b16 %v466
        %v495 = vunpack.c.l.b16 %v467
        %v496 = vunpack.c.l.b16 %v468
        %v497 = vunpack.c.l.b16 %v469
        %v498 = vunpack.c.l.b16 %v470
        %v499 = vunpack.c.l.b16 %v471
        %v500 = vpack.c.b16 %v495, %v494
        %v501 = vpack.c.b16 %v497, %v496
        %v502 = vpack.c.b16 %v499, %v498
        %v522 = vunpack.c.l.b16 %v472
        %v523 = vunpack.c.h.b16 %v472
        %v524 = vunpack.c.l.b16 %v473
        %v525 = vunpack.c.h.b16 %v473
        %v526 = vunpack.c.l.b16 %v474
        %v527 = vunpack.c.h.b16 %v474
        %v528 = vunpack.c.l.b16 %v475
        %v529 = vunpack.c.h.b16 %v475
        %v530 = vunpack.c.l.b16 %v476
        %v531 = vunpack.c.h.b16 %v476
        %v532 = vunpack.c.l.b16 %v477
        %v533 = vunpack.c.h.b16 %v477
        %v534 = vunpack.c.l.b16 %v478
        %v535 = vunpack.c.h.b16 %v478
        %v536 = vunpack.c.l.b16 %v479
        %v537 = vunpack.c.h.b16 %v479
        %v538 = vunpack.c.l.b16 %v480
        %v539 = vunpack.c.h.b16 %v480
        %v540 = vunpack.c.l.b16 %v481
        %v541 = vunpack.c.h.b16 %v481
        %v542 = vunpack.c.l.b16 %v482
        %v543 = vunpack.c.h.b16 %v482
        %v544 = vunpack.c.l.b16 %v483
        %v545 = vunpack.c.h.b16 %v483
        %v546 = vunpack.c.l.b16 %v484
        %v547 = vunpack.c.h.b16 %v484
        %v548 = vunpack.c.l.b16 %v485
        %v549 = vunpack.c.h.b16 %v485
        %v550 = vunpack.c.l.b16 %v486
        %v551 = vunpack.c.h.b16 %v486
        %v552 = vunpack.c.l.b16 %v487
        %v553 = vunpack.c.h.b16 %v487
        %v554 = vpack.c.b16 %v524, %v522
        %v555 = vpack.c.b16 %v525, %v523
        %v556 = vpack.c.b16 %v528, %v526
        %v557 = vpack.c.b16 %v529, %v527
        %v558 = vpack.c.b16 %v532, %v530
        %v559 = vpack.c.b16 %v533, %v531
        %v560 = vpack.c.b16 %v536, %v534
        %v561 = vpack.c.b16 %v537, %v535
        %v562 = vpack.c.b16 %v540, %v538
        %v563 = vpack.c.b16 %v541, %v539
        %v564 = vpack.c.b16 %v544, %v542
        %v565 = vpack.c.b16 %v545, %v543
        %v566 = vpack.c.b16 %v548, %v546
        %v567 = vpack.c.b16 %v549, %v547
        %v568 = vpack.c.b16 %v552, %v550
        %v569 = vpack.c.b16 %v553, %v551
        %586 = vmatprep.subr.bf16.mxu0 %v569
        %587 = vmatpush1.bf16.msra.mxu0 %v568
        %588 = vmatprep.subr.bf16.mxu0 %v567
        %589 = vmatpush1.bf16.msra.mxu0 %v566
        %590 = vmatprep.subr.bf16.mxu0 %v565
        %591 = vmatpush1.bf16.msra.mxu0 %v564
        %592 = vmatprep.subr.bf16.mxu0 %v563
        %593 = vmatpush1.bf16.msra.mxu0 %v562
        %594 = vmatprep.subr.bf16.mxu0 %v561
        %595 = vmatpush1.bf16.msra.mxu0 %v560
        %596 = vmatprep.subr.bf16.mxu0 %v559
        %597 = vmatpush1.bf16.msra.mxu0 %v558
        %598 = vmatprep.subr.bf16.mxu0 %v557
        %599 = vmatpush1.bf16.msra.mxu0 %v556
        %600 = vmatprep.subr.bf16.mxu0 %v555
        %601 = vmatpush1.bf16.msra.mxu0 %v554
        %602 = vmatprep.subr.bf16.mxu0 0
        %603 = vmatpush2.bf16.msra.mxu0 0
        %604 = vmatprep.subr.bf16.mxu0 0
        %605 = vmatpush2.bf16.msra.mxu0 0
        %606 = vmatprep.subr.bf16.mxu0 0
        %607 = vmatpush2.bf16.msra.mxu0 0
        %608 = vmatprep.subr.bf16.mxu0 0
        %609 = vmatpush2.bf16.msra.mxu0 0
        %610 = vmatprep.subr.bf16.mxu0 0
        %611 = vmatpush2.bf16.msra.mxu0 0
        %612 = vmatprep.subr.bf16.mxu0 0
        %613 = vmatpush2.bf16.msra.mxu0 0
        %614 = vmatprep.subr.bf16.mxu0 0
        %615 = vmatpush2.bf16.msra.mxu0 0
        %616 = vmatprep.subr.bf16.mxu0 0
        %617 = vmatpush2.bf16.msra.mxu0 0
        %618 = vmatprep.mubr.bf16.mxu0 0
        %619 = vmatmul.mubr.bf16.gmra.mxu0 %v500
        %v620 = vpop.f32.mrf.mxu0
        %v621 = vadd.f32 0.0, %v620
        %v622 = vpop.f32.mrf.mxu0
        %v623 = vpop.f32.mrf.mxu0
        %v624 = vadd.f32 0.0, %v623
        %v625 = vpop.f32.mrf.mxu0
        %v626 = vadd.f32 0.0, %v625
        %627 = vmatprep.mubr.bf16.mxu0 0
        %628 = vmatmul.mubr.bf16.gmra.mxu0 %v501
        %v629 = vpop.f32.mrf.mxu0
        %v630 = vadd.f32 0.0, %v629
        %v631 = vpop.f32.mrf.mxu0
        %v632 = vadd.f32 0.0, %v631
        %v633 = vpop.f32.mrf.mxu0
        %v634 = vadd.f32 0.0, %v633
        %v635 = vpop.f32.mrf.mxu0
        %v636 = vadd.f32 0.0, %v635
        %637 = vmatprep.mubr.bf16.mxu0 0
        %638 = vmatmul.mubr.bf16.gmra.mxu0 %v502
        %v639 = vpop.f32.mrf.mxu0
        %v640 = vadd.f32 0.0, %v639
        %v641 = vpop.f32.mrf.mxu0
        %v642 = vadd.f32 0.0, %v641
        %v643 = vpop.f32.mrf.mxu0
        %v644 = vadd.f32 0.0, %v643
        %v645 = vpop.f32.mrf.mxu0
        %646 = vdwg.mxu0
        %v647 = vld [vmem:[%s4] sm:$0x1]
        %v649 = vlaneseq
        %v650 = vshrl.u32 %v649, 7
        %v651 = vsub.s32 0, %v650
        %v652 = vrot.slane %v647, %v651
        %v654 = vadd.f32 %v621, %v652
        %v655 = vadd.f32 %v624, %v652
        %v656 = vadd.f32 %v630, %v652
        %v657 = vadd.f32 %v634, %v652
        %v658 = vadd.f32 %v640, %v652
        %v659 = vadd.f32 %v644, %v652
        %v660 = vmax.f32 %v654, 0.0
        %v661 = vmax.f32 %v655, 0.0
        %v662 = vmax.f32 %v656, 0.0
        %v663 = vmax.f32 %v657, 0.0
        %v664 = vmax.f32 %v658, 0.0
        %v665 = vmax.f32 %v659, 0.0
        %v666 = vld [vmem:[%s5] sm:$0x1]
        %v668 = vlaneseq
        %v669 = vshrl.u32 %v668, 7
        %v670 = vsub.s32 0, %v669
        %v671 = vrot.slane %v666, %v670
        %v673 = vadd.f32 %v626, %v671
        %v674 = vadd.f32 %v632, %v671
        %v675 = vadd.f32 %v636, %v671
        %v676 = vadd.f32 %v642, %v671
        %v677 = vld [vmem:[%s463] sm:$0xff]
        %v678 = vld [vmem:[%s463 + $0x8] sm:$0xff]
        %v679 = vld [vmem:[%s463 + $0x10] sm:$0xff]
        %v680 = vld [vmem:[%s463 + $0x18] sm:$0xff]
        %v681 = vld [vmem:[%s463 + $0x20] sm:$0xff]
        %v682 = vld [vmem:[%s463 + $0x28] sm:$0xff]
        %684 = vset.pattern.permute.xlu0 0
        %685 = vperm.xlu0 %684, %v677
        %v686 = vpop.permute.xlu0 %685
        %689 = vset.pattern.permute.xlu0 0
        %690 = vperm.xlu0 %689, %v678
        %v691 = vpop.permute.xlu0 %690
        %694 = vset.pattern.permute.xlu0 0
        %695 = vperm.xlu0 %694, %v679
        %v696 = vpop.permute.xlu0 %695
        %699 = vset.pattern.permute.xlu0 0
        %700 = vperm.xlu0 %699, %v680
        %v701 = vpop.permute.xlu0 %700
        %704 = vset.pattern.permute.xlu0 0
        %705 = vperm.xlu0 %704, %v681
        %v706 = vpop.permute.xlu0 %705
        %709 = vset.pattern.permute.xlu0 0
        %710 = vperm.xlu0 %709, %v682
        %v711 = vpop.permute.xlu0 %710
        %v713 = vmul.f32 %v660, %v686
        %v714 = vmul.f32 %v661, %v691
        %v715 = vmul.f32 %v662, %v696
        %v716 = vmul.f32 %v663, %v701
        %v717 = vmul.f32 %v664, %v706
        %v718 = vmul.f32 %v665, %v711
        %v719 = vrot.slane %v713, 7
        %v720 = vrot.slane %v714, 7
        %v721 = vrot.slane %v715, 7
        %v722 = vrot.slane %v716, 7
        %v723 = vrot.slane %v717, 7
        %v724 = vrot.slane %v718, 7
        %v725 = vlaneseq
        %v726 = vshrl.u32 %v725, 7
        %vm727 = vcmp.lt.s32.totalorder %v726, 1
        %v728 = vsel %vm727, %v723, %v724
        %v729 = vsel %vm727, %v722, %v723
        %v730 = vsel %vm727, %v721, %v722
        %v731 = vsel %vm727, %v720, %v721
        %v732 = vsel %vm727, %v719, %v720
        %v733 = vsel %vm727, %v724, %v719
        %734 = vset.pattern.permute.xlu0 1
        %735 = vperm.xlu0 %734, %v677
        %v736 = vpop.permute.xlu0 %735
        %738 = vset.pattern.permute.xlu0 1
        %739 = vperm.xlu0 %738, %v678
        %v740 = vpop.permute.xlu0 %739
        %742 = vset.pattern.permute.xlu0 1
        %743 = vperm.xlu0 %742, %v679
        %v744 = vpop.permute.xlu0 %743
        %746 = vset.pattern.permute.xlu0 1
        %747 = vperm.xlu0 %746, %v680
        %v748 = vpop.permute.xlu0 %747
        %750 = vset.pattern.permute.xlu0 1
        %751 = vperm.xlu0 %750, %v681
        %v752 = vpop.permute.xlu0 %751
        %754 = vset.pattern.permute.xlu0 1
        %755 = vperm.xlu0 %754, %v682
        %v756 = vpop.permute.xlu0 %755
        %v758 = vmul.f32 %v728, %v736
        %v759 = vmul.f32 %v733, %v740
        %v760 = vmul.f32 %v732, %v744
        %v761 = vmul.f32 %v731, %v748
        %v762 = vmul.f32 %v730, %v752
        %v763 = vmul.f32 %v729, %v756
        %v764 = vpack.c.bf16 %v759, %v758
        %v765 = vpack.c.bf16 %v761, %v760
        %v766 = vpack.c.bf16 %v763, %v762
        %v767 = vpack.c.bf16 %v713, %v718
        %v768 = vpack.c.bf16 %v715, %v714
        %v769 = vpack.c.bf16 %v717, %v716
        %v770 = vrot.slane %v713, 1
        %v771 = vrot.slane %v714, 1
        %v772 = vrot.slane %v715, 1
        %v773 = vrot.slane %v716, 1
        %v774 = vrot.slane %v717, 1
        %v775 = vrot.slane %v718, 1
        %vm776 = vcmp.lt.s32.totalorder %v726, 7
        %v777 = vsel %vm776, %v774, %v775
        %v778 = vsel %vm776, %v773, %v774
        %v779 = vsel %vm776, %v772, %v773
        %v780 = vsel %vm776, %v771, %v772
        %v781 = vsel %vm776, %v770, %v771
        %v782 = vsel %vm776, %v775, %v770
        %783 = vset.pattern.permute.xlu0 2
        %784 = vperm.xlu0 %783, %v677
        %v785 = vpop.permute.xlu0 %784
        %787 = vset.pattern.permute.xlu0 2
        %788 = vperm.xlu0 %787, %v678
        %v789 = vpop.permute.xlu0 %788
        %791 = vset.pattern.permute.xlu0 2
        %792 = vperm.xlu0 %791, %v679
        %v793 = vpop.permute.xlu0 %792
        %795 = vset.pattern.permute.xlu0 2
        %796 = vperm.xlu0 %795, %v680
        %v797 = vpop.permute.xlu0 %796
        %799 = vset.pattern.permute.xlu0 2
        %800 = vperm.xlu0 %799, %v681
        %v801 = vpop.permute.xlu0 %800
        %803 = vset.pattern.permute.xlu0 2
        %804 = vperm.xlu0 %803, %v682
        %v805 = vpop.permute.xlu0 %804
        %v807 = vmul.f32 %v782, %v785
        %v808 = vmul.f32 %v781, %v789
        %v809 = vmul.f32 %v780, %v793
        %v810 = vmul.f32 %v779, %v797
        %v811 = vmul.f32 %v778, %v801
        %v812 = vmul.f32 %v777, %v805
        %v813 = vpack.c.bf16 %v808, %v807
        %v814 = vpack.c.bf16 %v810, %v809
        %v815 = vpack.c.bf16 %v812, %v811
        %v816 = vld [vmem:[#allocation7] sm:$0xf]
        %v817 = vld [vmem:[#allocation7 + $0x4] sm:$0xf]
        %v818 = vld [vmem:[#allocation7 + $0x8] sm:$0xf]
        %v819 = vld [vmem:[#allocation7 + $0xc] sm:$0xf]
        %v820 = vld [vmem:[#allocation7 + $0x10] sm:$0xf]
        %v821 = vld [vmem:[#allocation7 + $0x14] sm:$0xf]
        %v822 = vld [vmem:[#allocation7 + $0x18] sm:$0xf]
        %v823 = vld [vmem:[#allocation7 + $0x1c] sm:$0xf]
        %v824 = vld [vmem:[#allocation7 + $0x20] sm:$0xf]
        %v825 = vld [vmem:[#allocation7 + $0x24] sm:$0xf]
        %v826 = vld [vmem:[#allocation7 + $0x28] sm:$0xf]
        %v827 = vld [vmem:[#allocation7 + $0x2c] sm:$0xf]
        %v828 = vld [vmem:[#allocation7 + $0x30] sm:$0xf]
        %v829 = vld [vmem:[#allocation7 + $0x34] sm:$0xf]
        %v830 = vld [vmem:[#allocation7 + $0x38] sm:$0xf]
        %v831 = vld [vmem:[#allocation7 + $0x3c] sm:$0xf]
        %v832 = vld [vmem:[#allocation7 + $0x40] sm:$0xf]
        %v833 = vld [vmem:[#allocation7 + $0x44] sm:$0xf]
        %v834 = vld [vmem:[#allocation7 + $0x48] sm:$0xf]
        %v835 = vld [vmem:[#allocation7 + $0x4c] sm:$0xf]
        %v836 = vld [vmem:[#allocation7 + $0x50] sm:$0xf]
        %v837 = vld [vmem:[#allocation7 + $0x54] sm:$0xf]
        %v838 = vld [vmem:[#allocation7 + $0x58] sm:$0xf]
        %v839 = vld [vmem:[#allocation7 + $0x5c] sm:$0xf]
        %v840 = vld [vmem:[#allocation7 + $0x60] sm:$0xf]
        %v841 = vld [vmem:[#allocation7 + $0x64] sm:$0xf]
        %v842 = vld [vmem:[#allocation7 + $0x68] sm:$0xf]
        %v843 = vld [vmem:[#allocation7 + $0x6c] sm:$0xf]
        %v844 = vld [vmem:[#allocation7 + $0x70] sm:$0xf]
        %v845 = vld [vmem:[#allocation7 + $0x74] sm:$0xf]
        %v846 = vld [vmem:[#allocation7 + $0x78] sm:$0xf]
        %v847 = vld [vmem:[#allocation7 + $0x7c] sm:$0xf]
        %v848 = vld [vmem:[#allocation7 + $0x80] sm:$0xf]
        %v849 = vld [vmem:[#allocation7 + $0x84] sm:$0xf]
        %v850 = vld [vmem:[#allocation7 + $0x88] sm:$0xf]
        %v851 = vld [vmem:[#allocation7 + $0x8c] sm:$0xf]
        %v852 = vld [vmem:[#allocation7 + $0x90] sm:$0xf]
        %v853 = vld [vmem:[#allocation7 + $0x94] sm:$0xf]
        %v854 = vld [vmem:[#allocation7 + $0x98] sm:$0xf]
        %v855 = vld [vmem:[#allocation7 + $0x9c] sm:$0xf]
        %v856 = vld [vmem:[#allocation7 + $0xa0] sm:$0xf]
        %v857 = vld [vmem:[#allocation7 + $0xa4] sm:$0xf]
        %v858 = vld [vmem:[#allocation7 + $0xa8] sm:$0xf]
        %v859 = vld [vmem:[#allocation7 + $0xac] sm:$0xf]
        %v860 = vld [vmem:[#allocation7 + $0xb0] sm:$0xf]
        %v861 = vld [vmem:[#allocation7 + $0xb4] sm:$0xf]
        %v862 = vld [vmem:[#allocation7 + $0xb8] sm:$0xf]
        %v863 = vld [vmem:[#allocation7 + $0xbc] sm:$0xf]
        %v864 = vmul.f32 %v733, %v736
        %v865 = vmul.f32 %v732, %v740
        %v866 = vmul.f32 %v731, %v744
        %v867 = vmul.f32 %v730, %v748
        %v868 = vmul.f32 %v729, %v752
        %v869 = vmul.f32 %v728, %v756
        %v870 = vpack.c.bf16 %v865, %v864
        %v871 = vpack.c.bf16 %v867, %v866
        %v872 = vpack.c.bf16 %v869, %v868
        %v873 = vpack.c.bf16 %v714, %v713
        %v874 = vpack.c.bf16 %v716, %v715
        %v875 = vpack.c.bf16 %v718, %v717
        %v876 = vmul.f32 %v781, %v785
        %v877 = vmul.f32 %v780, %v789
        %v878 = vmul.f32 %v779, %v793
        %v879 = vmul.f32 %v778, %v797
        %v880 = vmul.f32 %v777, %v801
        %v881 = vmul.f32 %v782, %v805
        %v882 = vpack.c.bf16 %v877, %v876
        %v883 = vpack.c.bf16 %v879, %v878
        %v884 = vpack.c.bf16 %v881, %v880
        %s885 = scalar_lea.vmem [#allocation7], 192
        %v886 = vld [vmem:[%s885] sm:$0xf]
        %v887 = vld [vmem:[%s885 + $0x4] sm:$0xf]
        %v888 = vld [vmem:[%s885 + $0x8] sm:$0xf]
        %v889 = vld [vmem:[%s885 + $0xc] sm:$0xf]
        %v890 = vld [vmem:[%s885 + $0x10] sm:$0xf]
        %v891 = vld [vmem:[%s885 + $0x14] sm:$0xf]
        %v892 = vld [vmem:[%s885 + $0x18] sm:$0xf]
        %v893 = vld [vmem:[%s885 + $0x1c] sm:$0xf]
        %v894 = vld [vmem:[%s885 + $0x20] sm:$0xf]
        %v895 = vld [vmem:[%s885 + $0x24] sm:$0xf]
        %v896 = vld [vmem:[%s885 + $0x28] sm:$0xf]
        %v897 = vld [vmem:[%s885 + $0x2c] sm:$0xf]
        %v898 = vld [vmem:[%s885 + $0x30] sm:$0xf]
        %v899 = vld [vmem:[%s885 + $0x34] sm:$0xf]
        %v900 = vld [vmem:[%s885 + $0x38] sm:$0xf]
        %v901 = vld [vmem:[%s885 + $0x3c] sm:$0xf]
        %v902 = vld [vmem:[%s885 + $0x40] sm:$0xf]
        %v903 = vld [vmem:[%s885 + $0x44] sm:$0xf]
        %v904 = vld [vmem:[%s885 + $0x48] sm:$0xf]
        %v905 = vld [vmem:[%s885 + $0x4c] sm:$0xf]
        %v906 = vld [vmem:[%s885 + $0x50] sm:$0xf]
        %v907 = vld [vmem:[%s885 + $0x54] sm:$0xf]
        %v908 = vld [vmem:[%s885 + $0x58] sm:$0xf]
        %v909 = vld [vmem:[%s885 + $0x5c] sm:$0xf]
        %v910 = vld [vmem:[%s885 + $0x60] sm:$0xf]
        %v911 = vld [vmem:[%s885 + $0x64] sm:$0xf]
        %v912 = vld [vmem:[%s885 + $0x68] sm:$0xf]
        %v913 = vld [vmem:[%s885 + $0x6c] sm:$0xf]
        %v914 = vld [vmem:[%s885 + $0x70] sm:$0xf]
        %v915 = vld [vmem:[%s885 + $0x74] sm:$0xf]
        %v916 = vld [vmem:[%s885 + $0x78] sm:$0xf]
        %v917 = vld [vmem:[%s885 + $0x7c] sm:$0xf]
        %v918 = vld [vmem:[%s885 + $0x80] sm:$0xf]
        %v919 = vld [vmem:[%s885 + $0x84] sm:$0xf]
        %v920 = vld [vmem:[%s885 + $0x88] sm:$0xf]
        %v921 = vld [vmem:[%s885 + $0x8c] sm:$0xf]
        %v922 = vld [vmem:[%s885 + $0x90] sm:$0xf]
        %v923 = vld [vmem:[%s885 + $0x94] sm:$0xf]
        %v924 = vld [vmem:[%s885 + $0x98] sm:$0xf]
        %v925 = vld [vmem:[%s885 + $0x9c] sm:$0xf]
        %v926 = vld [vmem:[%s885 + $0xa0] sm:$0xf]
        %v927 = vld [vmem:[%s885 + $0xa4] sm:$0xf]
        %v928 = vld [vmem:[%s885 + $0xa8] sm:$0xf]
        %v929 = vld [vmem:[%s885 + $0xac] sm:$0xf]
        %v930 = vld [vmem:[%s885 + $0xb0] sm:$0xf]
        %v931 = vld [vmem:[%s885 + $0xb4] sm:$0xf]
        %v932 = vld [vmem:[%s885 + $0xb8] sm:$0xf]
        %v933 = vld [vmem:[%s885 + $0xbc] sm:$0xf]
        %v982 = vunpack.c.l.b16 %v886
        %v983 = vunpack.c.l.b16 %v887
        %v984 = vunpack.c.l.b16 %v888
        %v985 = vunpack.c.l.b16 %v889
        %v986 = vunpack.c.l.b16 %v890
        %v987 = vunpack.c.l.b16 %v891
        %v988 = vunpack.c.l.b16 %v892
        %v989 = vunpack.c.l.b16 %v893
        %v990 = vunpack.c.l.b16 %v894
        %v991 = vunpack.c.l.b16 %v895
        %v992 = vunpack.c.l.b16 %v896
        %v993 = vunpack.c.l.b16 %v897
        %v994 = vunpack.c.l.b16 %v898
        %v995 = vunpack.c.l.b16 %v899
        %v996 = vunpack.c.l.b16 %v900
        %v997 = vunpack.c.l.b16 %v901
        %v998 = vunpack.c.l.b16 %v902
        %v999 = vunpack.c.l.b16 %v903
        %v1000 = vunpack.c.l.b16 %v904
        %v1001 = vunpack.c.l.b16 %v905
        %v1002 = vunpack.c.l.b16 %v906
        %v1003 = vunpack.c.l.b16 %v907
        %v1004 = vunpack.c.l.b16 %v908
        %v1005 = vunpack.c.l.b16 %v909
        %v1006 = vunpack.c.l.b16 %v910
        %v1007 = vunpack.c.l.b16 %v911
        %v1008 = vunpack.c.l.b16 %v912
        %v1009 = vunpack.c.l.b16 %v913
        %v1010 = vunpack.c.l.b16 %v914
        %v1011 = vunpack.c.l.b16 %v915
        %v1012 = vunpack.c.l.b16 %v916
        %v1013 = vunpack.c.l.b16 %v917
        %v1014 = vunpack.c.l.b16 %v918
        %v1015 = vunpack.c.l.b16 %v919
        %v1016 = vunpack.c.l.b16 %v920
        %v1017 = vunpack.c.l.b16 %v921
        %v1018 = vunpack.c.l.b16 %v922
        %v1019 = vunpack.c.l.b16 %v923
        %v1020 = vunpack.c.l.b16 %v924
        %v1021 = vunpack.c.l.b16 %v925
        %v1022 = vunpack.c.l.b16 %v926
        %v1023 = vunpack.c.l.b16 %v927
        %v1024 = vunpack.c.l.b16 %v928
        %v1025 = vunpack.c.l.b16 %v929
        %v1026 = vunpack.c.l.b16 %v930
        %v1027 = vunpack.c.l.b16 %v931
        %v1028 = vunpack.c.l.b16 %v932
        %v1029 = vunpack.c.l.b16 %v933
        %v1030 = vpack.c.b16 %v983, %v982
        %v1031 = vpack.c.b16 %v985, %v984
        %v1032 = vpack.c.b16 %v987, %v986
        %v1033 = vpack.c.b16 %v989, %v988
        %v1034 = vpack.c.b16 %v991, %v990
        %v1035 = vpack.c.b16 %v993, %v992
        %v1036 = vpack.c.b16 %v995, %v994
        %v1037 = vpack.c.b16 %v997, %v996
        %v1038 = vpack.c.b16 %v999, %v998
        %v1039 = vpack.c.b16 %v1001, %v1000
        %v1040 = vpack.c.b16 %v1003, %v1002
        %v1041 = vpack.c.b16 %v1005, %v1004
        %v1042 = vpack.c.b16 %v1007, %v1006
        %v1043 = vpack.c.b16 %v1009, %v1008
        %v1044 = vpack.c.b16 %v1011, %v1010
        %v1045 = vpack.c.b16 %v1013, %v1012
        %v1046 = vpack.c.b16 %v1015, %v1014
        %v1047 = vpack.c.b16 %v1017, %v1016
        %v1048 = vpack.c.b16 %v1019, %v1018
        %v1049 = vpack.c.b16 %v1021, %v1020
        %v1050 = vpack.c.b16 %v1023, %v1022
        %v1051 = vpack.c.b16 %v1025, %v1024
        %v1052 = vpack.c.b16 %v1027, %v1026
        %v1053 = vpack.c.b16 %v1029, %v1028
        %1078 = vmatprep.subr.bf16.mxu0 0
        %1079 = vmatpush1.bf16.msra.mxu0 %v1037
        %1080 = vmatprep.subr.bf16.mxu0 0
        %1081 = vmatpush1.bf16.msra.mxu0 %v1036
        %1082 = vmatprep.subr.bf16.mxu0 0
        %1083 = vmatpush1.bf16.msra.mxu0 %v1035
        %1084 = vmatprep.subr.bf16.mxu0 0
        %1085 = vmatpush1.bf16.msra.mxu0 %v1034
        %1086 = vmatprep.subr.bf16.mxu0 0
        %1087 = vmatpush1.bf16.msra.mxu0 %v1033
        %1088 = vmatprep.subr.bf16.mxu0 0
        %1089 = vmatpush1.bf16.msra.mxu0 %v1032
        %1090 = vmatprep.subr.bf16.mxu0 0
        %1091 = vmatpush1.bf16.msra.mxu0 %v1031
        %1092 = vmatprep.subr.bf16.mxu0 0
        %1093 = vmatpush1.bf16.msra.mxu0 %v1030
        %1094 = vmatprep.subr.bf16.mxu0 0
        %1095 = vmatpush2.bf16.msra.mxu0 %v1045
        %1096 = vmatprep.subr.bf16.mxu0 0
        %1097 = vmatpush2.bf16.msra.mxu0 %v1044
        %1098 = vmatprep.subr.bf16.mxu0 0
        %1099 = vmatpush2.bf16.msra.mxu0 %v1043
        %1100 = vmatprep.subr.bf16.mxu0 0
        %1101 = vmatpush2.bf16.msra.mxu0 %v1042
        %1102 = vmatprep.subr.bf16.mxu0 0
        %1103 = vmatpush2.bf16.msra.mxu0 %v1041
        %1104 = vmatprep.subr.bf16.mxu0 0
        %1105 = vmatpush2.bf16.msra.mxu0 %v1040
        %1106 = vmatprep.subr.bf16.mxu0 0
        %1107 = vmatpush2.bf16.msra.mxu0 %v1039
        %1108 = vmatprep.subr.bf16.mxu0 0
        %1109 = vmatpush2.bf16.msra.mxu0 %v1038
        %1110 = vmatprep.mubr.bf16.mxu0 %v873
        %1111 = vmatmul.mubr.bf16.gmra.mxu0 %v870
        %v1112 = vpop.f32.mrf.mxu0
        %v1113 = vpop.f32.mrf.mxu0
        %v1114 = vpop.f32.mrf.mxu0
        %v1115 = vadd.f32 0.0, %v1114
        %v1116 = vpop.f32.mrf.mxu0
        %1117 = vmatprep.mubr.bf16.mxu0 %v874
        %1118 = vmatmul.mubr.bf16.gmra.mxu0 %v871
        %v1119 = vpop.f32.mrf.mxu0
        %v1120 = vadd.f32 0.0, %v1119
        %v1121 = vpop.f32.mrf.mxu0
        %v1122 = vpop.f32.mrf.mxu0
        %v1123 = vadd.f32 0.0, %v1122
        %v1124 = vpop.f32.mrf.mxu0
        %1125 = vmatprep.mubr.bf16.mxu0 %v875
        %1126 = vmatmul.mubr.bf16.gmra.mxu0 %v872
        %v1127 = vpop.f32.mrf.mxu0
        %v1128 = vadd.f32 0.0, %v1127
        %v1129 = vpop.f32.mrf.mxu0
        %v1130 = vpop.f32.mrf.mxu0
        %v1131 = vpop.f32.mrf.mxu0
        %1132 = vdwg.mxu0
        %1133 = vmatprep.subr.bf16.mxu0 0
        %1134 = vmatpush1.bf16.msra.mxu0 %v1053
        %1135 = vmatprep.subr.bf16.mxu0 0
        %1136 = vmatpush1.bf16.msra.mxu0 %v1052
        %1137 = vmatprep.subr.bf16.mxu0 0
        %1138 = vmatpush1.bf16.msra.mxu0 %v1051
        %1139 = vmatprep.subr.bf16.mxu0 0
        %1140 = vmatpush1.bf16.msra.mxu0 %v1050
        %1141 = vmatprep.subr.bf16.mxu0 0
        %1142 = vmatpush1.bf16.msra.mxu0 %v1049
        %1143 = vmatprep.subr.bf16.mxu0 0
        %1144 = vmatpush1.bf16.msra.mxu0 %v1048
        %1145 = vmatprep.subr.bf16.mxu0 0
        %1146 = vmatpush1.bf16.msra.mxu0 %v1047
        %1147 = vmatprep.subr.bf16.mxu0 0
        %1148 = vmatpush1.bf16.msra.mxu0 %v1046
        %1149 = vmatprep.subr.bf16.mxu0 0
        %1150 = vmatpush2.bf16.msra.mxu0 0
        %1151 = vmatprep.subr.bf16.mxu0 0
        %1152 = vmatpush2.bf16.msra.mxu0 0
        %1153 = vmatprep.subr.bf16.mxu0 0
        %1154 = vmatpush2.bf16.msra.mxu0 0
        %1155 = vmatprep.subr.bf16.mxu0 0
        %1156 = vmatpush2.bf16.msra.mxu0 0
        %1157 = vmatprep.subr.bf16.mxu0 0
        %1158 = vmatpush2.bf16.msra.mxu0 0
        %1159 = vmatprep.subr.bf16.mxu0 0
        %1160 = vmatpush2.bf16.msra.mxu0 0
        %1161 = vmatprep.subr.bf16.mxu0 0
        %1162 = vmatpush2.bf16.msra.mxu0 0
        %1163 = vmatprep.subr.bf16.mxu0 0
        %1164 = vmatpush2.bf16.msra.mxu0 0
        %1165 = vmatprep.mubr.bf16.mxu0 0
        %1166 = vmatmul.mubr.bf16.gmra.mxu0 %v882
        %v1167 = vpop.f32.mrf.mxu0
        %v1168 = vpop.f32.mrf.mxu0
        %v1169 = vpop.f32.mrf.mxu0
        %v1170 = vadd.f32 %v1115, %v1169
        %v1171 = vpop.f32.mrf.mxu0
        %1172 = vmatprep.mubr.bf16.mxu0 0
        %1173 = vmatmul.mubr.bf16.gmra.mxu0 %v883
        %v1174 = vpop.f32.mrf.mxu0
        %v1175 = vadd.f32 %v1120, %v1174
        %v1176 = vpop.f32.mrf.mxu0
        %v1177 = vpop.f32.mrf.mxu0
        %v1178 = vadd.f32 %v1123, %v1177
        %v1179 = vpop.f32.mrf.mxu0
        %1180 = vmatprep.mubr.bf16.mxu0 0
        %1181 = vmatmul.mubr.bf16.gmra.mxu0 %v884
        %v1182 = vpop.f32.mrf.mxu0
        %v1183 = vadd.f32 %v1128, %v1182
        %v1184 = vpop.f32.mrf.mxu0
        %v1185 = vpop.f32.mrf.mxu0
        %v1186 = vpop.f32.mrf.mxu0
        %1187 = vdwg.mxu0
        %v1236 = vunpack.c.l.b16 %v816
        %v1237 = vunpack.c.l.b16 %v817
        %v1238 = vunpack.c.l.b16 %v818
        %v1239 = vunpack.c.l.b16 %v819
        %v1240 = vunpack.c.l.b16 %v820
        %v1241 = vunpack.c.l.b16 %v821
        %v1242 = vunpack.c.l.b16 %v822
        %v1243 = vunpack.c.l.b16 %v823
        %v1244 = vunpack.c.l.b16 %v824
        %v1245 = vunpack.c.l.b16 %v825
        %v1246 = vunpack.c.l.b16 %v826
        %v1247 = vunpack.c.l.b16 %v827
        %v1248 = vunpack.c.l.b16 %v828
        %v1249 = vunpack.c.l.b16 %v829
        %v1250 = vunpack.c.l.b16 %v830
        %v1251 = vunpack.c.l.b16 %v831
        %v1252 = vunpack.c.l.b16 %v832
        %v1253 = vunpack.c.l.b16 %v833
        %v1254 = vunpack.c.l.b16 %v834
        %v1255 = vunpack.c.l.b16 %v835
        %v1256 = vunpack.c.l.b16 %v836
        %v1257 = vunpack.c.l.b16 %v837
        %v1258 = vunpack.c.l.b16 %v838
        %v1259 = vunpack.c.l.b16 %v839
        %v1260 = vunpack.c.l.b16 %v840
        %v1261 = vunpack.c.l.b16 %v841
        %v1262 = vunpack.c.l.b16 %v842
        %v1263 = vunpack.c.l.b16 %v843
        %v1264 = vunpack.c.l.b16 %v844
        %v1265 = vunpack.c.l.b16 %v845
        %v1266 = vunpack.c.l.b16 %v846
        %v1267 = vunpack.c.l.b16 %v847
        %v1268 = vunpack.c.l.b16 %v848
        %v1269 = vunpack.c.l.b16 %v849
        %v1270 = vunpack.c.l.b16 %v850
        %v1271 = vunpack.c.l.b16 %v851
        %v1272 = vunpack.c.l.b16 %v852
        %v1273 = vunpack.c.l.b16 %v853
        %v1274 = vunpack.c.l.b16 %v854
        %v1275 = vunpack.c.l.b16 %v855
        %v1276 = vunpack.c.l.b16 %v856
        %v1277 = vunpack.c.l.b16 %v857
        %v1278 = vunpack.c.l.b16 %v858
        %v1279 = vunpack.c.l.b16 %v859
        %v1280 = vunpack.c.l.b16 %v860
        %v1281 = vunpack.c.l.b16 %v861
        %v1282 = vunpack.c.l.b16 %v862
        %v1283 = vunpack.c.l.b16 %v863
        %v1284 = vpack.c.b16 %v1237, %v1236
        %v1285 = vpack.c.b16 %v1239, %v1238
        %v1286 = vpack.c.b16 %v1241, %v1240
        %v1287 = vpack.c.b16 %v1243, %v1242
        %v1288 = vpack.c.b16 %v1245, %v1244
        %v1289 = vpack.c.b16 %v1247, %v1246
        %v1290 = vpack.c.b16 %v1249, %v1248
        %v1291 = vpack.c.b16 %v1251, %v1250
        %v1292 = vpack.c.b16 %v1253, %v1252
        %v1293 = vpack.c.b16 %v1255, %v1254
        %v1294 = vpack.c.b16 %v1257, %v1256
        %v1295 = vpack.c.b16 %v1259, %v1258
        %v1296 = vpack.c.b16 %v1261, %v1260
        %v1297 = vpack.c.b16 %v1263, %v1262
        %v1298 = vpack.c.b16 %v1265, %v1264
        %v1299 = vpack.c.b16 %v1267, %v1266
        %v1300 = vpack.c.b16 %v1269, %v1268
        %v1301 = vpack.c.b16 %v1271, %v1270
        %v1302 = vpack.c.b16 %v1273, %v1272
        %v1303 = vpack.c.b16 %v1275, %v1274
        %v1304 = vpack.c.b16 %v1277, %v1276
        %v1305 = vpack.c.b16 %v1279, %v1278
        %v1306 = vpack.c.b16 %v1281, %v1280
        %v1307 = vpack.c.b16 %v1283, %v1282
        %1332 = vmatprep.subr.bf16.mxu0 0
        %1333 = vmatpush1.bf16.msra.mxu0 %v1291
        %1334 = vmatprep.subr.bf16.mxu0 0
        %1335 = vmatpush1.bf16.msra.mxu0 %v1290
        %1336 = vmatprep.subr.bf16.mxu0 0
        %1337 = vmatpush1.bf16.msra.mxu0 %v1289
        %1338 = vmatprep.subr.bf16.mxu0 0
        %1339 = vmatpush1.bf16.msra.mxu0 %v1288
        %1340 = vmatprep.subr.bf16.mxu0 0
        %1341 = vmatpush1.bf16.msra.mxu0 %v1287
        %1342 = vmatprep.subr.bf16.mxu0 0
        %1343 = vmatpush1.bf16.msra.mxu0 %v1286
        %1344 = vmatprep.subr.bf16.mxu0 0
        %1345 = vmatpush1.bf16.msra.mxu0 %v1285
        %1346 = vmatprep.subr.bf16.mxu0 0
        %1347 = vmatpush1.bf16.msra.mxu0 %v1284
        %1348 = vmatprep.subr.bf16.mxu0 0
        %1349 = vmatpush2.bf16.msra.mxu0 %v1299
        %1350 = vmatprep.subr.bf16.mxu0 0
        %1351 = vmatpush2.bf16.msra.mxu0 %v1298
        %1352 = vmatprep.subr.bf16.mxu0 0
        %1353 = vmatpush2.bf16.msra.mxu0 %v1297
        %1354 = vmatprep.subr.bf16.mxu0 0
        %1355 = vmatpush2.bf16.msra.mxu0 %v1296
        %1356 = vmatprep.subr.bf16.mxu0 0
        %1357 = vmatpush2.bf16.msra.mxu0 %v1295
        %1358 = vmatprep.subr.bf16.mxu0 0
        %1359 = vmatpush2.bf16.msra.mxu0 %v1294
        %1360 = vmatprep.subr.bf16.mxu0 0
        %1361 = vmatpush2.bf16.msra.mxu0 %v1293
        %1362 = vmatprep.subr.bf16.mxu0 0
        %1363 = vmatpush2.bf16.msra.mxu0 %v1292
        %1364 = vmatprep.mubr.bf16.mxu0 %v767
        %1365 = vmatmul.mubr.bf16.gmra.mxu0 %v764
        %v1366 = vpop.f32.mrf.mxu0
        %v1367 = vpop.f32.mrf.mxu0
        %v1368 = vpop.f32.mrf.mxu0
        %v1369 = vadd.f32 %v1170, %v1368
        %v1370 = vpop.f32.mrf.mxu0
        %1371 = vmatprep.mubr.bf16.mxu0 %v768
        %1372 = vmatmul.mubr.bf16.gmra.mxu0 %v765
        %v1373 = vpop.f32.mrf.mxu0
        %v1374 = vadd.f32 %v1175, %v1373
        %v1375 = vpop.f32.mrf.mxu0
        %v1376 = vpop.f32.mrf.mxu0
        %v1377 = vadd.f32 %v1178, %v1376
        %v1378 = vpop.f32.mrf.mxu0
        %1379 = vmatprep.mubr.bf16.mxu0 %v769
        %1380 = vmatmul.mubr.bf16.gmra.mxu0 %v766
        %v1381 = vpop.f32.mrf.mxu0
        %v1382 = vadd.f32 %v1183, %v1381
        %v1383 = vpop.f32.mrf.mxu0
        %v1384 = vpop.f32.mrf.mxu0
        %v1385 = vpop.f32.mrf.mxu0
        %1386 = vdwg.mxu0
        %1387 = vmatprep.subr.bf16.mxu0 0
        %1388 = vmatpush1.bf16.msra.mxu0 %v1307
        %1389 = vmatprep.subr.bf16.mxu0 0
        %1390 = vmatpush1.bf16.msra.mxu0 %v1306
        %1391 = vmatprep.subr.bf16.mxu0 0
        %1392 = vmatpush1.bf16.msra.mxu0 %v1305
        %1393 = vmatprep.subr.bf16.mxu0 0
        %1394 = vmatpush1.bf16.msra.mxu0 %v1304
        %1395 = vmatprep.subr.bf16.mxu0 0
        %1396 = vmatpush1.bf16.msra.mxu0 %v1303
        %1397 = vmatprep.subr.bf16.mxu0 0
        %1398 = vmatpush1.bf16.msra.mxu0 %v1302
        %1399 = vmatprep.subr.bf16.mxu0 0
        %1400 = vmatpush1.bf16.msra.mxu0 %v1301
        %1401 = vmatprep.subr.bf16.mxu0 0
        %1402 = vmatpush1.bf16.msra.mxu0 %v1300
        %1403 = vmatprep.subr.bf16.mxu0 0
        %1404 = vmatpush2.bf16.msra.mxu0 0
        %1405 = vmatprep.subr.bf16.mxu0 0
        %1406 = vmatpush2.bf16.msra.mxu0 0
        %1407 = vmatprep.subr.bf16.mxu0 0
        %1408 = vmatpush2.bf16.msra.mxu0 0
        %1409 = vmatprep.subr.bf16.mxu0 0
        %1410 = vmatpush2.bf16.msra.mxu0 0
        %1411 = vmatprep.subr.bf16.mxu0 0
        %1412 = vmatpush2.bf16.msra.mxu0 0
        %1413 = vmatprep.subr.bf16.mxu0 0
        %1414 = vmatpush2.bf16.msra.mxu0 0
        %1415 = vmatprep.subr.bf16.mxu0 0
        %1416 = vmatpush2.bf16.msra.mxu0 0
        %1417 = vmatprep.subr.bf16.mxu0 0
        %1418 = vmatpush2.bf16.msra.mxu0 0
        %1419 = vmatprep.mubr.bf16.mxu0 0
        %1420 = vmatmul.mubr.bf16.gmra.mxu0 %v813
        %v1421 = vpop.f32.mrf.mxu0
        %v1422 = vpop.f32.mrf.mxu0
        %v1423 = vpop.f32.mrf.mxu0
        %v1424 = vadd.f32 %v1369, %v1423
        %v1425 = vpop.f32.mrf.mxu0
        %1426 = vmatprep.mubr.bf16.mxu0 0
        %1427 = vmatmul.mubr.bf16.gmra.mxu0 %v814
        %v1428 = vpop.f32.mrf.mxu0
        %v1429 = vadd.f32 %v1374, %v1428
        %v1430 = vpop.f32.mrf.mxu0
        %v1431 = vpop.f32.mrf.mxu0
        %v1432 = vadd.f32 %v1377, %v1431
        %v1433 = vpop.f32.mrf.mxu0
        %1434 = vmatprep.mubr.bf16.mxu0 0
        %1435 = vmatmul.mubr.bf16.gmra.mxu0 %v815
        %v1436 = vpop.f32.mrf.mxu0
        %v1437 = vadd.f32 %v1382, %v1436
        %v1438 = vpop.f32.mrf.mxu0
        %v1439 = vpop.f32.mrf.mxu0
        %v1440 = vpop.f32.mrf.mxu0
        %1441 = vdwg.mxu0
        %v1442 = vmul.f32 %v732, %v736
        %v1443 = vmul.f32 %v731, %v740
        %v1444 = vmul.f32 %v730, %v744
        %v1445 = vmul.f32 %v729, %v748
        %v1446 = vmul.f32 %v728, %v752
        %v1447 = vmul.f32 %v733, %v756
        %v1448 = vpack.c.bf16 %v1443, %v1442
        %v1449 = vpack.c.bf16 %v1445, %v1444
        %v1450 = vpack.c.bf16 %v1447, %v1446
        %v1451 = vmul.f32 %v780, %v785
        %v1452 = vmul.f32 %v779, %v789
        %v1453 = vmul.f32 %v778, %v793
        %v1454 = vmul.f32 %v777, %v797
        %v1455 = vmul.f32 %v782, %v801
        %v1456 = vmul.f32 %v781, %v805
        %v1457 = vpack.c.bf16 %v1452, %v1451
        %v1458 = vpack.c.bf16 %v1454, %v1453
        %v1459 = vpack.c.bf16 %v1456, %v1455
        %s1460 = scalar_lea.vmem [#allocation7], 384
        %v1461 = vld [vmem:[%s1460] sm:$0xf]
        %v1462 = vld [vmem:[%s1460 + $0x4] sm:$0xf]
        %v1463 = vld [vmem:[%s1460 + $0x8] sm:$0xf]
        %v1464 = vld [vmem:[%s1460 + $0xc] sm:$0xf]
        %v1465 = vld [vmem:[%s1460 + $0x10] sm:$0xf]
        %v1466 = vld [vmem:[%s1460 + $0x14] sm:$0xf]
        %v1467 = vld [vmem:[%s1460 + $0x18] sm:$0xf]
        %v1468 = vld [vmem:[%s1460 + $0x1c] sm:$0xf]
        %v1469 = vld [vmem:[%s1460 + $0x20] sm:$0xf]
        %v1470 = vld [vmem:[%s1460 + $0x24] sm:$0xf]
        %v1471 = vld [vmem:[%s1460 + $0x28] sm:$0xf]
        %v1472 = vld [vmem:[%s1460 + $0x2c] sm:$0xf]
        %v1473 = vld [vmem:[%s1460 + $0x30] sm:$0xf]
        %v1474 = vld [vmem:[%s1460 + $0x34] sm:$0xf]
        %v1475 = vld [vmem:[%s1460 + $0x38] sm:$0xf]
        %v1476 = vld [vmem:[%s1460 + $0x3c] sm:$0xf]
        %v1477 = vld [vmem:[%s1460 + $0x40] sm:$0xf]
        %v1478 = vld [vmem:[%s1460 + $0x44] sm:$0xf]
        %v1479 = vld [vmem:[%s1460 + $0x48] sm:$0xf]
        %v1480 = vld [vmem:[%s1460 + $0x4c] sm:$0xf]
        %v1481 = vld [vmem:[%s1460 + $0x50] sm:$0xf]
        %v1482 = vld [vmem:[%s1460 + $0x54] sm:$0xf]
        %v1483 = vld [vmem:[%s1460 + $0x58] sm:$0xf]
        %v1484 = vld [vmem:[%s1460 + $0x5c] sm:$0xf]
        %v1485 = vld [vmem:[%s1460 + $0x60] sm:$0xf]
        %v1486 = vld [vmem:[%s1460 + $0x64] sm:$0xf]
        %v1487 = vld [vmem:[%s1460 + $0x68] sm:$0xf]
        %v1488 = vld [vmem:[%s1460 + $0x6c] sm:$0xf]
        %v1489 = vld [vmem:[%s1460 + $0x70] sm:$0xf]
        %v1490 = vld [vmem:[%s1460 + $0x74] sm:$0xf]
        %v1491 = vld [vmem:[%s1460 + $0x78] sm:$0xf]
        %v1492 = vld [vmem:[%s1460 + $0x7c] sm:$0xf]
        %v1493 = vld [vmem:[%s1460 + $0x80] sm:$0xf]
        %v1494 = vld [vmem:[%s1460 + $0x84] sm:$0xf]
        %v1495 = vld [vmem:[%s1460 + $0x88] sm:$0xf]
        %v1496 = vld [vmem:[%s1460 + $0x8c] sm:$0xf]
        %v1497 = vld [vmem:[%s1460 + $0x90] sm:$0xf]
        %v1498 = vld [vmem:[%s1460 + $0x94] sm:$0xf]
        %v1499 = vld [vmem:[%s1460 + $0x98] sm:$0xf]
        %v1500 = vld [vmem:[%s1460 + $0x9c] sm:$0xf]
        %v1501 = vld [vmem:[%s1460 + $0xa0] sm:$0xf]
        %v1502 = vld [vmem:[%s1460 + $0xa4] sm:$0xf]
        %v1503 = vld [vmem:[%s1460 + $0xa8] sm:$0xf]
        %v1504 = vld [vmem:[%s1460 + $0xac] sm:$0xf]
        %v1505 = vld [vmem:[%s1460 + $0xb0] sm:$0xf]
        %v1506 = vld [vmem:[%s1460 + $0xb4] sm:$0xf]
        %v1507 = vld [vmem:[%s1460 + $0xb8] sm:$0xf]
        %v1508 = vld [vmem:[%s1460 + $0xbc] sm:$0xf]
        %v1557 = vunpack.c.l.b16 %v1461
        %v1558 = vunpack.c.l.b16 %v1462
        %v1559 = vunpack.c.l.b16 %v1463
        %v1560 = vunpack.c.l.b16 %v1464
        %v1561 = vunpack.c.l.b16 %v1465
        %v1562 = vunpack.c.l.b16 %v1466
        %v1563 = vunpack.c.l.b16 %v1467
        %v1564 = vunpack.c.l.b16 %v1468
        %v1565 = vunpack.c.l.b16 %v1469
        %v1566 = vunpack.c.l.b16 %v1470
        %v1567 = vunpack.c.l.b16 %v1471
        %v1568 = vunpack.c.l.b16 %v1472
        %v1569 = vunpack.c.l.b16 %v1473
        %v1570 = vunpack.c.l.b16 %v1474
        %v1571 = vunpack.c.l.b16 %v1475
        %v1572 = vunpack.c.l.b16 %v1476
        %v1573 = vunpack.c.l.b16 %v1477
        %v1574 = vunpack.c.l.b16 %v1478
        %v1575 = vunpack.c.l.b16 %v1479
        %v1576 = vunpack.c.l.b16 %v1480
        %v1577 = vunpack.c.l.b16 %v1481
        %v1578 = vunpack.c.l.b16 %v1482
        %v1579 = vunpack.c.l.b16 %v1483
        %v1580 = vunpack.c.l.b16 %v1484
        %v1581 = vunpack.c.l.b16 %v1485
        %v1582 = vunpack.c.l.b16 %v1486
        %v1583 = vunpack.c.l.b16 %v1487
        %v1584 = vunpack.c.l.b16 %v1488
        %v1585 = vunpack.c.l.b16 %v1489
        %v1586 = vunpack.c.l.b16 %v1490
        %v1587 = vunpack.c.l.b16 %v1491
        %v1588 = vunpack.c.l.b16 %v1492
        %v1589 = vunpack.c.l.b16 %v1493
        %v1590 = vunpack.c.l.b16 %v1494
        %v1591 = vunpack.c.l.b16 %v1495
        %v1592 = vunpack.c.l.b16 %v1496
        %v1593 = vunpack.c.l.b16 %v1497
        %v1594 = vunpack.c.l.b16 %v1498
        %v1595 = vunpack.c.l.b16 %v1499
        %v1596 = vunpack.c.l.b16 %v1500
        %v1597 = vunpack.c.l.b16 %v1501
        %v1598 = vunpack.c.l.b16 %v1502
        %v1599 = vunpack.c.l.b16 %v1503
        %v1600 = vunpack.c.l.b16 %v1504
        %v1601 = vunpack.c.l.b16 %v1505
        %v1602 = vunpack.c.l.b16 %v1506
        %v1603 = vunpack.c.l.b16 %v1507
        %v1604 = vunpack.c.l.b16 %v1508
        %v1605 = vpack.c.b16 %v1558, %v1557
        %v1606 = vpack.c.b16 %v1560, %v1559
        %v1607 = vpack.c.b16 %v1562, %v1561
        %v1608 = vpack.c.b16 %v1564, %v1563
        %v1609 = vpack.c.b16 %v1566, %v1565
        %v1610 = vpack.c.b16 %v1568, %v1567
        %v1611 = vpack.c.b16 %v1570, %v1569
        %v1612 = vpack.c.b16 %v1572, %v1571
        %v1613 = vpack.c.b16 %v1574, %v1573
        %v1614 = vpack.c.b16 %v1576, %v1575
        %v1615 = vpack.c.b16 %v1578, %v1577
        %v1616 = vpack.c.b16 %v1580, %v1579
        %v1617 = vpack.c.b16 %v1582, %v1581
        %v1618 = vpack.c.b16 %v1584, %v1583
        %v1619 = vpack.c.b16 %v1586, %v1585
        %v1620 = vpack.c.b16 %v1588, %v1587
        %v1621 = vpack.c.b16 %v1590, %v1589
        %v1622 = vpack.c.b16 %v1592, %v1591
        %v1623 = vpack.c.b16 %v1594, %v1593
        %v1624 = vpack.c.b16 %v1596, %v1595
        %v1625 = vpack.c.b16 %v1598, %v1597
        %v1626 = vpack.c.b16 %v1600, %v1599
        %v1627 = vpack.c.b16 %v1602, %v1601
        %v1628 = vpack.c.b16 %v1604, %v1603
        %1653 = vmatprep.subr.bf16.mxu0 0
        %1654 = vmatpush1.bf16.msra.mxu0 %v1612
        %1655 = vmatprep.subr.bf16.mxu0 0
        %1656 = vmatpush1.bf16.msra.mxu0 %v1611
        %1657 = vmatprep.subr.bf16.mxu0 0
        %1658 = vmatpush1.bf16.msra.mxu0 %v1610
        %1659 = vmatprep.subr.bf16.mxu0 0
        %1660 = vmatpush1.bf16.msra.mxu0 %v1609
        %1661 = vmatprep.subr.bf16.mxu0 0
        %1662 = vmatpush1.bf16.msra.mxu0 %v1608
        %1663 = vmatprep.subr.bf16.mxu0 0
        %1664 = vmatpush1.bf16.msra.mxu0 %v1607
        %1665 = vmatprep.subr.bf16.mxu0 0
        %1666 = vmatpush1.bf16.msra.mxu0 %v1606
        %1667 = vmatprep.subr.bf16.mxu0 0
        %1668 = vmatpush1.bf16.msra.mxu0 %v1605
        %1669 = vmatprep.subr.bf16.mxu0 0
        %1670 = vmatpush2.bf16.msra.mxu0 %v1620
        %1671 = vmatprep.subr.bf16.mxu0 0
        %1672 = vmatpush2.bf16.msra.mxu0 %v1619
        %1673 = vmatprep.subr.bf16.mxu0 0
        %1674 = vmatpush2.bf16.msra.mxu0 %v1618
        %1675 = vmatprep.subr.bf16.mxu0 0
        %1676 = vmatpush2.bf16.msra.mxu0 %v1617
        %1677 = vmatprep.subr.bf16.mxu0 0
        %1678 = vmatpush2.bf16.msra.mxu0 %v1616
        %1679 = vmatprep.subr.bf16.mxu0 0
        %1680 = vmatpush2.bf16.msra.mxu0 %v1615
        %1681 = vmatprep.subr.bf16.mxu0 0
        %1682 = vmatpush2.bf16.msra.mxu0 %v1614
        %1683 = vmatprep.subr.bf16.mxu0 0
        %1684 = vmatpush2.bf16.msra.mxu0 %v1613
        %1685 = vmatprep.mubr.bf16.mxu0 %v768
        %1686 = vmatmul.mubr.bf16.gmra.mxu0 %v1448
        %v1687 = vpop.f32.mrf.mxu0
        %v1688 = vpop.f32.mrf.mxu0
        %v1689 = vpop.f32.mrf.mxu0
        %v1690 = vadd.f32 0.0, %v1689
        %v1691 = vpop.f32.mrf.mxu0
        %1692 = vmatprep.mubr.bf16.mxu0 %v769
        %1693 = vmatmul.mubr.bf16.gmra.mxu0 %v1449
        %v1694 = vpop.f32.mrf.mxu0
        %v1695 = vadd.f32 0.0, %v1694
        %v1696 = vpop.f32.mrf.mxu0
        %v1697 = vpop.f32.mrf.mxu0
        %v1698 = vadd.f32 0.0, %v1697
        %v1699 = vpop.f32.mrf.mxu0
        %1700 = vmatprep.mubr.bf16.mxu0 %v767
        %1701 = vmatmul.mubr.bf16.gmra.mxu0 %v1450
        %v1702 = vpop.f32.mrf.mxu0
        %v1703 = vadd.f32 0.0, %v1702
        %v1704 = vpop.f32.mrf.mxu0
        %v1705 = vpop.f32.mrf.mxu0
        %v1706 = vpop.f32.mrf.mxu0
        %1707 = vdwg.mxu0
        %1708 = vmatprep.subr.bf16.mxu0 0
        %1709 = vmatpush1.bf16.msra.mxu0 %v1628
        %1710 = vmatprep.subr.bf16.mxu0 0
        %1711 = vmatpush1.bf16.msra.mxu0 %v1627
        %1712 = vmatprep.subr.bf16.mxu0 0
        %1713 = vmatpush1.bf16.msra.mxu0 %v1626
        %1714 = vmatprep.subr.bf16.mxu0 0
        %1715 = vmatpush1.bf16.msra.mxu0 %v1625
        %1716 = vmatprep.subr.bf16.mxu0 0
        %1717 = vmatpush1.bf16.msra.mxu0 %v1624
        %1718 = vmatprep.subr.bf16.mxu0 0
        %1719 = vmatpush1.bf16.msra.mxu0 %v1623
        %1720 = vmatprep.subr.bf16.mxu0 0
        %1721 = vmatpush1.bf16.msra.mxu0 %v1622
        %1722 = vmatprep.subr.bf16.mxu0 0
        %1723 = vmatpush1.bf16.msra.mxu0 %v1621
        %1724 = vmatprep.subr.bf16.mxu0 0
        %1725 = vmatpush2.bf16.msra.mxu0 0
        %1726 = vmatprep.subr.bf16.mxu0 0
        %1727 = vmatpush2.bf16.msra.mxu0 0
        %1728 = vmatprep.subr.bf16.mxu0 0
        %1729 = vmatpush2.bf16.msra.mxu0 0
        %1730 = vmatprep.subr.bf16.mxu0 0
        %1731 = vmatpush2.bf16.msra.mxu0 0
        %1732 = vmatprep.subr.bf16.mxu0 0
        %1733 = vmatpush2.bf16.msra.mxu0 0
        %1734 = vmatprep.subr.bf16.mxu0 0
        %1735 = vmatpush2.bf16.msra.mxu0 0
        %1736 = vmatprep.subr.bf16.mxu0 0
        %1737 = vmatpush2.bf16.msra.mxu0 0
        %1738 = vmatprep.subr.bf16.mxu0 0
        %1739 = vmatpush2.bf16.msra.mxu0 0
        %1740 = vmatprep.mubr.bf16.mxu0 0
        %1741 = vmatmul.mubr.bf16.gmra.mxu0 %v1457
        %v1742 = vpop.f32.mrf.mxu0
        %v1743 = vpop.f32.mrf.mxu0
        %v1744 = vpop.f32.mrf.mxu0
        %v1745 = vadd.f32 %v1690, %v1744
        %v1746 = vpop.f32.mrf.mxu0
        %1747 = vmatprep.mubr.bf16.mxu0 0
        %1748 = vmatmul.mubr.bf16.gmra.mxu0 %v1458
        %v1749 = vpop.f32.mrf.mxu0
        %v1750 = vadd.f32 %v1695, %v1749
        %v1751 = vpop.f32.mrf.mxu0
        %v1752 = vpop.f32.mrf.mxu0
        %v1753 = vadd.f32 %v1698, %v1752
        %v1754 = vpop.f32.mrf.mxu0
        %1755 = vmatprep.mubr.bf16.mxu0 0
        %1756 = vmatmul.mubr.bf16.gmra.mxu0 %v1459
        %v1757 = vpop.f32.mrf.mxu0
        %v1758 = vadd.f32 %v1703, %v1757
        %v1759 = vpop.f32.mrf.mxu0
        %v1760 = vpop.f32.mrf.mxu0
        %v1761 = vpop.f32.mrf.mxu0
        %1762 = vdwg.mxu0
        %v1763 = vadd.f32 %v1424, %v1745
        %v1764 = vadd.f32 %v1429, %v1750
        %v1765 = vadd.f32 %v1432, %v1753
        %v1766 = vadd.f32 %v1437, %v1758
        %v1767 = vld [vmem:[%s7] sm:$0x1]
        %v1769 = vlaneseq
        %v1770 = vshrl.u32 %v1769, 7
        %v1771 = vsub.s32 0, %v1770
        %v1772 = vrot.slane %v1767, %v1771
        %v1774 = vadd.f32 %v1763, %v1772
        %v1775 = vadd.f32 %v1764, %v1772
        %v1776 = vadd.f32 %v1765, %v1772
        %v1777 = vadd.f32 %v1766, %v1772
        %v1778 = vmax.f32 %v1774, 0.0
        %v1779 = vmax.f32 %v1775, 0.0
        %v1780 = vmax.f32 %v1776, 0.0
        %v1781 = vmax.f32 %v1777, 0.0
        %v1782 = vpack.c.bf16 %v1779, %v1778
        %v1783 = vpack.c.bf16 %v1781, %v1780
        %v1784 = vld [vmem:[#allocation9] sm:$0xf]
        %v1785 = vld [vmem:[#allocation9 + $0x4] sm:$0xf]
        %v1786 = vld [vmem:[#allocation9 + $0x8] sm:$0xf]
        %v1787 = vld [vmem:[#allocation9 + $0xc] sm:$0xf]
        %v1788 = vld [vmem:[#allocation9 + $0x10] sm:$0xf]
        %v1789 = vld [vmem:[#allocation9 + $0x14] sm:$0xf]
        %v1790 = vld [vmem:[#allocation9 + $0x18] sm:$0xf]
        %v1791 = vld [vmem:[#allocation9 + $0x1c] sm:$0xf]
        %v1792 = vld [vmem:[#allocation9 + $0x20] sm:$0xf]
        %v1793 = vld [vmem:[#allocation9 + $0x24] sm:$0xf]
        %v1794 = vld [vmem:[#allocation9 + $0x28] sm:$0xf]
        %v1795 = vld [vmem:[#allocation9 + $0x2c] sm:$0xf]
        %v1796 = vld [vmem:[#allocation9 + $0x30] sm:$0xf]
        %v1797 = vld [vmem:[#allocation9 + $0x34] sm:$0xf]
        %v1798 = vld [vmem:[#allocation9 + $0x38] sm:$0xf]
        %v1799 = vld [vmem:[#allocation9 + $0x3c] sm:$0xf]
        %v1800 = vld [vmem:[%s9] sm:$0x1]
        %v1802 = vlaneseq
        %v1803 = vshrl.u32 %v1802, 7
        %v1804 = vsub.s32 0, %v1803
        %v1805 = vrot.slane %v1800, %v1804
        %v1823 = vunpack.c.l.b16 %v1784
        %v1824 = vunpack.c.l.b16 %v1785
        %v1825 = vunpack.c.l.b16 %v1786
        %v1826 = vunpack.c.l.b16 %v1787
        %v1827 = vunpack.c.l.b16 %v1788
        %v1828 = vunpack.c.l.b16 %v1789
        %v1829 = vunpack.c.l.b16 %v1790
        %v1830 = vunpack.c.l.b16 %v1791
        %v1831 = vunpack.c.l.b16 %v1792
        %v1832 = vunpack.c.l.b16 %v1793
        %v1833 = vunpack.c.l.b16 %v1794
        %v1834 = vunpack.c.l.b16 %v1795
        %v1835 = vunpack.c.l.b16 %v1796
        %v1836 = vunpack.c.l.b16 %v1797
        %v1837 = vunpack.c.l.b16 %v1798
        %v1838 = vunpack.c.l.b16 %v1799
        %v1839 = vpack.c.b16 %v1824, %v1823
        %v1840 = vpack.c.b16 %v1826, %v1825
        %v1841 = vpack.c.b16 %v1828, %v1827
        %v1842 = vpack.c.b16 %v1830, %v1829
        %v1843 = vpack.c.b16 %v1832, %v1831
        %v1844 = vpack.c.b16 %v1834, %v1833
        %v1845 = vpack.c.b16 %v1836, %v1835
        %v1846 = vpack.c.b16 %v1838, %v1837
        %1855 = vmatprep.subr.bf16.mxu0 0
        %1856 = vmatpush1.bf16.msra.mxu0 %v1846
        %1857 = vmatprep.subr.bf16.mxu0 0
        %1858 = vmatpush1.bf16.msra.mxu0 %v1845
        %1859 = vmatprep.subr.bf16.mxu0 0
        %1860 = vmatpush1.bf16.msra.mxu0 %v1844
        %1861 = vmatprep.subr.bf16.mxu0 0
        %1862 = vmatpush1.bf16.msra.mxu0 %v1843
        %1863 = vmatprep.subr.bf16.mxu0 0
        %1864 = vmatpush1.bf16.msra.mxu0 %v1842
        %1865 = vmatprep.subr.bf16.mxu0 0
        %1866 = vmatpush1.bf16.msra.mxu0 %v1841
        %1867 = vmatprep.subr.bf16.mxu0 0
        %1868 = vmatpush1.bf16.msra.mxu0 %v1840
        %1869 = vmatprep.subr.bf16.mxu0 0
        %1870 = vmatpush1.bf16.msra.mxu0 %v1839
        %1871 = vmatprep.subr.bf16.mxu0 0
        %1872 = vmatpush2.bf16.msra.mxu0 0
        %1873 = vmatprep.subr.bf16.mxu0 0
        %1874 = vmatpush2.bf16.msra.mxu0 0
        %1875 = vmatprep.subr.bf16.mxu0 0
        %1876 = vmatpush2.bf16.msra.mxu0 0
        %1877 = vmatprep.subr.bf16.mxu0 0
        %1878 = vmatpush2.bf16.msra.mxu0 0
        %1879 = vmatprep.subr.bf16.mxu0 0
        %1880 = vmatpush2.bf16.msra.mxu0 0
        %1881 = vmatprep.subr.bf16.mxu0 0
        %1882 = vmatpush2.bf16.msra.mxu0 0
        %1883 = vmatprep.subr.bf16.mxu0 0
        %1884 = vmatpush2.bf16.msra.mxu0 0
        %1885 = vmatprep.subr.bf16.mxu0 0
        %1886 = vmatpush2.bf16.msra.mxu0 0
        %1887 = vmatprep.mubr.bf16.mxu0 0
        %1888 = vmatmul.mubr.bf16.gmra.mxu0 %v1782
        %v1889 = vpop.f32.mrf.mxu0
        %v1890 = vadd.f32 %v1805, %v1889
        %v1891 = vpop.f32.mrf.mxu0
        %v1892 = vpop.f32.mrf.mxu0
        %v1893 = vadd.f32 %v1805, %v1892
        %v1894 = vpop.f32.mrf.mxu0
        %1895 = vmatprep.mubr.bf16.mxu0 0
        %1896 = vmatmul.mubr.bf16.gmra.mxu0 %v1783
        %v1897 = vpop.f32.mrf.mxu0
        %v1898 = vadd.f32 %v1805, %v1897
        %v1899 = vpop.f32.mrf.mxu0
        %v1900 = vpop.f32.mrf.mxu0
        %v1901 = vadd.f32 %v1805, %v1900
        %v1902 = vpop.f32.mrf.mxu0
        %1903 = vdwg.mxu0
        %s1904 = smul.u32 %s31, 128
        %s1905 = sld [smem:[#allocation2 + %s1904]]
        %v1906 = vstv %s1905
        %v1907 = vmul.f32 %v1890, %v1906
        %v1908 = vmul.f32 %v1893, %v1906
        %v1909 = vmul.f32 %v1898, %v1906
        %v1910 = vmul.f32 %v1901, %v1906
        %v1911 = vadd.f32 %v673, %v1907
        %v1912 = vadd.f32 %v674, %v1908
        %v1913 = vadd.f32 %v675, %v1909
        %v1914 = vadd.f32 %v676, %v1910
        %v1915 = vmax.f32 %v1911, 0.0
        %v1916 = vmax.f32 %v1912, 0.0
        %v1917 = vmax.f32 %v1913, 0.0
        %v1918 = vmax.f32 %v1914, 0.0
        %v1919 = vpack.c.bf16 %v1915, %v1915
        %v1920 = vpack.c.bf16 %v1916, %v1916
        %v1921 = vpack.c.bf16 %v1917, %v1917
        %v1922 = vpack.c.bf16 %v1918, %v1918
        %1923 = vst [vmem:[%s449] sm:$0xf] %v1919
        %1924 = vst [vmem:[%s449 + $0x4] sm:$0xf] %v1920
        %1925 = vst [vmem:[%s449 + $0x8] sm:$0xf] %v1921
        %1926 = vst [vmem:[%s449 + $0xc] sm:$0xf] %v1922
        %s1927 = sand.u32 %s271, 1
        %s1928 = scalar_lea.sflag [#allocation4], %s1927
        %s1929 = sand.u32 %s271, 1
        %s1930 = smul.addr %s1929, 16
        %s1931 = scalar_lea.vmem [#allocation10], %s1930
        // Predicated region
        $region77: #{tpu_custom_call.1} parent=59 // pred_check
          %p1932 = pneg %p281
        $region78: #{tpu_custom_call.1} parent=59 // pred_check_branch
          %1934 = sbr.rel (%p1932) target = $region80
        $region79: #{tpu_custom_call.1} parent=59 // pred_region
          %s1935 = smul.u32 4, %s32
          %s1937 = ssub.s32 256, 256
          %1938 = vsyncadd %s1928, %s1937
          %s1939 = smul.addr %s31, 8
          %s1940 = sadd.s32 %s1935, %s1939
          %s1941 = smul.addr %s1940, 64
          %s1942 = scalar_lea.hbm %s10, %s1941
          %s1943 = sshll.u32 %s1931, 4
          %s1944 = int_to_ptr.vmem [resolvable:$true] %s1943
          %1949 = dma.vmem_to_hbm [thread:$0]  %s1944, 256, %s1942, %s1928, 64, 64, 4
        $region80: #{tpu_custom_call.1} parent=59 // pred_fallthru
          _
      $region60: #{tpu_custom_call.1} parent=5 // pred_fallthru
        _
      %p1950 = scmp.le.s32.totalorder 2, %s22
      // Predicated region
      $region81: #{tpu_custom_call.1} parent=5 // pred_check
        %p1951 = pneg %p1950
      $region82: #{tpu_custom_call.1} parent=5 // pred_check_branch
        %1953 = sbr.rel (%p1951) target = $region84
      $region83: #{tpu_custom_call.1} parent=5 // pred_region
        %s1954 = ssub.s32 %s22, 2
        // Predicated region
        $region85: #{tpu_custom_call.1} parent=83 // pred_check
          %p1955 = pneg %p287
        $region86: #{tpu_custom_call.1} parent=83 // pred_check_branch
          %1957 = sbr.rel (%p1955) target = $region88
        $region87: #{tpu_custom_call.1} parent=83 // pred_region
          %s1958 = sand.u32 %s272, 1
          %s1959 = scalar_lea.sflag [#allocation4], %s1958
          %s1960 = sand.u32 %s272, 1
          %s1961 = smul.addr %s1960, 16
          %s1962 = scalar_lea.vmem [#allocation10], %s1961
          %1963 = dma.done %s1959, 256
        $region88: #{tpu_custom_call.1} parent=83 // pred_fallthru
          _
      $region84: #{tpu_custom_call.1} parent=5 // pred_fallthru
        _
    $region6: #{tpu_custom_call.1} parent=1 // loop_footer
      %s26 = sadd.s32 1, %s22
    $region7: #{tpu_custom_call.1} parent=1 // loop_footer_branch
      %21 = sbr.rel target = $region3
    $region8: #{tpu_custom_call.1} parent=1 // loop_exit
      _
    %1964 = vsyncpa [#allocation3], 1
    %s1965 = scalar_lea.sflag [#allocation3], 1
    %1966 = vsyncpa %s1965, 1
    %1967 = vsyncpa [#allocation8], 1
    %1968 = vsyncpa [#allocation4], 1
    %s1969 = scalar_lea.sflag [#allocation4], 1
    %1970 = vsyncpa %s1969, 1
    %1971 = vsyncpa [#allocation5], 1
    %s1972 = scalar_lea.sflag [#allocation5], 1
    %1973 = vsyncpa %s1972, 1

</llo_original>
